<compile_context>
chip_gen: v6e
topology: v6e:2x2x1
jax: 0.10.0
libtpu: 0.0.40
codegen_flags: <defaults>
</compile_context>

<pallas_src>
import jax
import jax.numpy as jnp
from jax.experimental import pallas as pl
from jax.experimental.pallas import tpu as pltpu

# ----------------------------- hyper-params ---------------------------------
N = 2            # batch
C = 32           # channels == out_channels
E = 16           # emb_channels
H = W = 8        # spatial
G = 32           # GroupNorm groups (karlo `normalization()` uses 32 groups)
EPS = 1e-5
PADL = 16        # lane padding on each side of the flattened-HW line buffer (>= W + 1)


# --------------------- one-time parameter packing (hoisted) -------------------
def prepare_resblock_params(p):
    """Pack PyTorch-layout ResBlock weights for the fused kernel.  Run ONCE at setup."""
    def col(v):                                   # per-channel vector -> [C, 1] column
        return v.reshape(-1, 1).astype(jnp.float32)

    def conv_k_major(w_pt):                       # [Cout,Cin,3,3] -> [Cout, 9*Cin]
        co, ci = w_pt.shape[0], w_pt.shape[1]     # K index = (ky*3 + kx)*Cin + ci
        return jnp.transpose(w_pt, (0, 2, 3, 1)).reshape(co, 9 * ci).astype(jnp.float32)

    return {
        "gn1_w": col(p["gn1_w"]), "gn1_b": col(p["gn1_b"]),
        "w1": conv_k_major(p["conv1_w"]), "cb1": col(p["conv1_b"]),
        "ew": p["emb_w"].astype(jnp.float32),     # [C, E] (PyTorch Linear weight layout)
        "eb": col(p["emb_b"]),
        "gn2_w": col(p["gn2_w"]), "gn2_b": col(p["gn2_b"]),
        "w2": conv_k_major(p["conv2_w"]), "cb2": col(p["conv2_b"]),
    }


# ------------------------------- fused forward --------------------------------
def _resblock_forward_impl(x_nchw, emb, pp):
    """ResBlock.forward, default path (no up/down, no scale_shift_norm,
    out_channels == channels -> skip_connection = Identity).  Expects f32 inputs."""
    n, c, h, w = x_nchw.shape
    hw = h * w
    e_dim = emb.shape[1]
    assert c % G == 0 and c // G == 1, "kernel specialized for GroupNorm group size 1"
    assert PADL >= w + 1

    x3 = x_nchw.reshape(n, c, hw)                 # metadata-only reshape (channel-first kept)
    emb3 = emb.reshape(n, 1, e_dim)

    def kernel(x_ref, emb_ref,
               g1_ref, b1_ref, w1_ref, cb1_ref,
               ew_ref, eb_ref,
               g2_ref, b2_ref, w2_ref, cb2_ref,
               o_ref, ypad_ref):
        x = x_ref[0]                              # [C, HW], channel-first

        # Zero only the read border of the line buffer (unconditional -> safe with
        # dimension_semantics=("parallel",)); the interior is rewritten by each conv.
        ypad_ref[:, :PADL] = jnp.zeros((c, PADL), jnp.float32)
        ypad_ref[:, PADL + hw:] = jnp.zeros((c, PADL), jnp.float32)

        # W-boundary masks over the flattened spatial lane axis (the H boundary is
        # handled for free by the zero border of ypad_ref).
        pos = jax.lax.broadcasted_iota(jnp.int32, (1, hw), 1)
        wcol = jnp.bitwise_and(pos, w - 1) if (w & (w - 1)) == 0 else pos % w
        mask_l = (wcol > 0).astype(jnp.float32)       # tap reads w-1 -> invalid at w == 0
        mask_r = (wcol < w - 1).astype(jnp.float32)   # tap reads w+1 -> invalid at w == W-1

        def gn_silu(z, g_ref, b_ref):
            # GroupNorm specialized for G == C (group size 1): per-channel (= per-row)
            # stats over the HW lanes, then GroupNorm32's swish.
            # TODO(synk): generalize to group size > 1 (needs channel->group aggregation).
            mu = jnp.mean(z, axis=1, keepdims=True)
            zc = z - mu
            var = jnp.mean(zc * zc, axis=1, keepdims=True)
            y = zc * jax.lax.rsqrt(var + EPS) * g_ref[...] + b_ref[...]
            return y * jax.nn.sigmoid(y)

        def conv3x3(y, w_ref, b_ref):
            # 'same' 3x3 conv as ONE im2col MXU dot: [Cout, 9C] x [9C, HW].
            ypad_ref[:, PADL:PADL + hw] = y
            blocks = []
            for ky in range(3):
                for kx in range(3):
                    d = (ky - 1) * w + (kx - 1)                 # flattened-HW lane shift
                    blk = y if d == 0 else ypad_ref[:, PADL + d:PADL + d + hw]
                    if kx == 0:
                        blk = blk * mask_l
                    elif kx == 2:
                        blk = blk * mask_r
                    blocks.append(blk)
            rhs = jnp.concatenate(blocks, axis=0)               # [9C, HW]
            out = jnp.dot(w_ref[...], rhs, preferred_element_type=jnp.float32)
            return out + b_ref[...]                             # bias [Cout, 1]

        # ---- in_layers: GroupNorm32(swish=1) -> Identity -> conv3x3 ----
        h1 = conv3x3(gn_silu(x, g1_ref, b1_ref), w1_ref, cb1_ref)

        # ---- emb_layers: SiLU -> Linear(E -> C); VPU mul + lane reduce (no MXU) ----
        e = emb_ref[0]                                          # [1, E]
        e = e * jax.nn.sigmoid(e)
        h1 = h1 + (jnp.sum(ew_ref[...] * e, axis=1, keepdims=True) + eb_ref[...])

        # ---- out_layers: GroupNorm32(swish=1) -> Dropout(eval: identity) -> conv3x3 ----
        # TODO(synk): train-mode dropout (RNG mask) not implemented.
        h2 = conv3x3(gn_silu(h1, g2_ref, b2_ref), w2_ref, cb2_ref)

        # ---- skip_connection (Identity since out_channels == channels) ----
        o_ref[0] = h2 + x

    full2 = lambda i: (0, 0)
    in_specs = [
        pl.BlockSpec((1, c, hw), lambda i: (i, 0, 0)),                 # x (channel-first)
        pl.BlockSpec((1, 1, e_dim), lambda i: (i, 0, 0)),              # emb
        pl.BlockSpec((c, 1), full2), pl.BlockSpec((c, 1), full2),      # gn1 gamma/beta
        pl.BlockSpec((c, 9 * c), full2), pl.BlockSpec((c, 1), full2),  # conv1 w/b
        pl.BlockSpec((c, e_dim), full2), pl.BlockSpec((c, 1), full2),  # emb linear w/b
        pl.BlockSpec((c, 1), full2), pl.BlockSpec((c, 1), full2),      # gn2 gamma/beta
        pl.BlockSpec((c, 9 * c), full2), pl.BlockSpec((c, 1), full2),  # conv2 w/b
    ]

    out = pl.pallas_call(
        kernel,
        out_shape=jax.ShapeDtypeStruct((n, c, hw), jnp.float32),
        grid_spec=pltpu.PrefetchScalarGridSpec(
            num_scalar_prefetch=0,
            grid=(n,),
            in_specs=in_specs,
            out_specs=pl.BlockSpec((1, c, hw), lambda i: (i, 0, 0)),
            scratch_shapes=[pltpu.VMEM((c, hw + 2 * PADL), jnp.float32)],
        ),
        compiler_params=pltpu.CompilerParams(
            dimension_semantics=("parallel",),   # v7x: one batch element per TensorCore
        ),
    )(x3, emb3,
      pp["gn1_w"], pp["gn1_b"], pp["w1"], pp["cb1"],
      pp["ew"], pp["eb"],
      pp["gn2_w"], pp["gn2_b"], pp["w2"], pp["cb2"])
    return out.reshape(n, c, h, w)


resblock_forward = jax.jit(_resblock_forward_impl)


# ----------------------------- pure-JAX reference ----------------------------
def _ref_forward(x, emb, p):
    def gn_silu(z, g, b):
        n, c, h, w = z.shape
        zg = z.reshape(n, G, c // G, h, w)
        m = zg.mean(axis=(2, 3, 4), keepdims=True)
        v = ((zg - m) ** 2).mean(axis=(2, 3, 4), keepdims=True)
        y = ((zg - m) / jnp.sqrt(v + EPS)).reshape(n, c, h, w)
        y = y * g[None, :, None, None] + b[None, :, None, None]
        return y * jax.nn.sigmoid(y)

    def conv(z, w_pt, b):
        y = jax.lax.conv_general_dilated(
            z, w_pt, (1, 1), "SAME", dimension_numbers=("NCHW", "OIHW", "NCHW"))
        return y + b[None, :, None, None]

    hh = gn_silu(x, p["gn1_w"], p["gn1_b"])
    hh = conv(hh, p["conv1_w"], p["conv1_b"])
    e = emb * jax.nn.sigmoid(emb)
    eo = e @ p["emb_w"].T + p["emb_b"]
    hh = hh + eo[:, :, None, None]
    hh = gn_silu(hh, p["gn2_w"], p["gn2_b"])
    hh = conv(hh, p["conv2_w"], p["conv2_b"])
    return x + hh


# ---------------------------------- main --------------------------------------
if __name__ == "__main__":
    key = jax.random.PRNGKey(0)
    ks = jax.random.split(key, 10)
    params = {
        # normalization(channels): GroupNorm32 weight/bias
        "gn1_w": jax.random.normal(ks[0], (C,), jnp.float32) * 0.1 + 1.0,
        "gn1_b": jax.random.normal(ks[1], (C,), jnp.float32) * 0.1,
        # conv_nd(2, channels, out_channels, 3, padding=1)
        "conv1_w": jax.random.normal(ks[2], (C, C, 3, 3), jnp.float32) * 0.05,
        "conv1_b": jax.random.normal(ks[3], (C,), jnp.float32) * 0.05,
        # linear(emb_channels, out_channels)
        "emb_w": jax.random.normal(ks[4], (C, E), jnp.float32) * 0.1,
        "emb_b": jax.random.normal(ks[5], (C,), jnp.float32) * 0.1,
        # normalization(out_channels)
        "gn2_w": jax.random.normal(ks[6], (C,), jnp.float32) * 0.1 + 1.0,
        "gn2_b": jax.random.normal(ks[7], (C,), jnp.float32) * 0.1,
        # zero_module(conv_nd(...)) is zero-init in the original; use nonzero values
        # here so the second conv path is actually exercised.
        "conv2_w": jax.random.normal(ks[8], (C, C, 3, 3), jnp.float32) * 0.05,
        "conv2_b": jnp.zeros((C,), jnp.float32),
    }
    kx_, ke_ = jax.random.split(ks[9])
    x = jax.random.normal(kx_, (N, C, H, W), jnp.float32)    # NCHW like the PyTorch module
    emb = jax.random.normal(ke_, (N, E), jnp.float32)

    packed = prepare_resblock_params(params)                 # one-time packing (hoisted)
    packed = jax.tree_util.tree_map(jax.block_until_ready, packed)

    out = jax.block_until_ready(resblock_forward(x, emb, packed))
    ref = _ref_forward(x, emb, params)
    assert out.shape == (N, C, H, W)
    err = float(jnp.max(jnp.abs(out - ref)))
    assert jnp.allclose(out, ref, atol=2e-3, rtol=2e-3), err
    print("KERNEL_OK")
</pallas_src>

<mosaic_0001>
module attributes {stable_mosaic.version = 11 : i64} {
  func.func @kernel(%arg0: i32, %arg1: memref<1x32x64xf32, #tpu.memory_space<vmem>>, %arg2: memref<1x1x16xf32, #tpu.memory_space<vmem>>, %arg3: memref<32x1xf32, #tpu.memory_space<vmem>>, %arg4: memref<32x1xf32, #tpu.memory_space<vmem>>, %arg5: memref<32x288xf32, #tpu.memory_space<vmem>>, %arg6: memref<32x1xf32, #tpu.memory_space<vmem>>, %arg7: memref<32x16xf32, #tpu.memory_space<vmem>>, %arg8: memref<32x1xf32, #tpu.memory_space<vmem>>, %arg9: memref<32x1xf32, #tpu.memory_space<vmem>>, %arg10: memref<32x1xf32, #tpu.memory_space<vmem>>, %arg11: memref<32x288xf32, #tpu.memory_space<vmem>>, %arg12: memref<32x1xf32, #tpu.memory_space<vmem>>, %arg13: memref<1x32x64xf32, #tpu.memory_space<vmem>>, %arg14: memref<32x96xf32, #tpu.memory_space<vmem>>) attributes {dimension_semantics = [#tpu.dimension_semantics<parallel>], iteration_bounds = array<i64: 2>, scalar_prefetch = 0 : i64, scratch_operands = 1 : i64, tpu.core_type = #tpu.core_type<tc>, window_params = [{transform_indices = @transform_0, window_bounds = array<i64: 1, 32, 64>}, {transform_indices = @transform_1, window_bounds = array<i64: 1, 1, 16>}, {pipeline_mode = #tpu.pipeline_mode<synchronous>, transform_indices = @transform_2, window_bounds = array<i64: 32, 1>}, {pipeline_mode = #tpu.pipeline_mode<synchronous>, transform_indices = @transform_3, window_bounds = array<i64: 32, 1>}, {pipeline_mode = #tpu.pipeline_mode<synchronous>, transform_indices = @transform_4, window_bounds = array<i64: 32, 288>}, {pipeline_mode = #tpu.pipeline_mode<synchronous>, transform_indices = @transform_5, window_bounds = array<i64: 32, 1>}, {pipeline_mode = #tpu.pipeline_mode<synchronous>, transform_indices = @transform_6, window_bounds = array<i64: 32, 16>}, {pipeline_mode = #tpu.pipeline_mode<synchronous>, transform_indices = @transform_7, window_bounds = array<i64: 32, 1>}, {pipeline_mode = #tpu.pipeline_mode<synchronous>, transform_indices = @transform_8, window_bounds = array<i64: 32, 1>}, {pipeline_mode = #tpu.pipeline_mode<synchronous>, transform_indices = @transform_9, window_bounds = array<i64: 32, 1>}, {pipeline_mode = #tpu.pipeline_mode<synchronous>, transform_indices = @transform_10, window_bounds = array<i64: 32, 288>}, {pipeline_mode = #tpu.pipeline_mode<synchronous>, transform_indices = @transform_11, window_bounds = array<i64: 32, 1>}, {transform_indices = @transform_12, window_bounds = array<i64: 1, 32, 64>}]} {
    %c0 = arith.constant 0 : index
    %c0_0 = arith.constant 0 : index
    %c0_1 = arith.constant 0 : index
    %0 = vector.load %arg1[%c0, %c0_0, %c0_1] : memref<1x32x64xf32, #tpu.memory_space<vmem>>, vector<1x32x64xf32>
    %1 = vector.shape_cast %0 : vector<1x32x64xf32> to vector<32x64xf32>
    %cst = arith.constant 0.000000e+00 : f32
    %2 = vector.broadcast %cst : f32 to vector<32x16xf32>
    %c0_2 = arith.constant 0 : index
    %c0_3 = arith.constant 0 : index
    %3 = vector.load %arg14[%c0_2, %c0_3] : memref<32x96xf32, #tpu.memory_space<vmem>>, vector<32x16xf32>
    tpu.vector_store %arg14[%c0_2, %c0_3], %2 {strides = array<i32>} : memref<32x96xf32, #tpu.memory_space<vmem>>, vector<32x16xf32>,
    %cst_4 = arith.constant 0.000000e+00 : f32
    %4 = vector.broadcast %cst_4 : f32 to vector<32x16xf32>
    %c0_5 = arith.constant 0 : index
    %c80 = arith.constant 80 : index
    %5 = vector.load %arg14[%c0_5, %c80] : memref<32x96xf32, #tpu.memory_space<vmem>>, vector<32x16xf32>
    tpu.vector_store %arg14[%c0_5, %c80], %4 {strides = array<i32>} : memref<32x96xf32, #tpu.memory_space<vmem>>, vector<32x16xf32>,
    %6 = tpu.iota {dimensions = array<i32: 1>} : vector<1x64xi32>
    %c7_i32 = arith.constant 7 : i32
    %7 = vector.broadcast %c7_i32 : i32 to vector<1x64xi32>
    %8 = arith.andi %6, %7 : vector<1x64xi32>
    %c0_i32 = arith.constant 0 : i32
    %9 = vector.broadcast %c0_i32 : i32 to vector<1x64xi32>
    %10 = arith.cmpi sgt, %8, %9 : vector<1x64xi32>
    %11 = arith.extui %10 : vector<1x64xi1> to vector<1x64xi32>
    %12 = arith.sitofp %11 : vector<1x64xi32> to vector<1x64xf32>
    %c7_i32_6 = arith.constant 7 : i32
    %13 = vector.broadcast %c7_i32_6 : i32 to vector<1x64xi32>
    %14 = arith.cmpi slt, %8, %13 : vector<1x64xi32>
    %15 = arith.extui %14 : vector<1x64xi1> to vector<1x64xi32>
    %16 = arith.sitofp %15 : vector<1x64xi32> to vector<1x64xf32>
    %cst_7 = arith.constant dense<0.000000e+00> : vector<32xf32>
    %17 = vector.multi_reduction <add>, %1, %cst_7 [1] : vector<32x64xf32> to vector<32xf32>
    %18 = vector.shape_cast %17 : vector<32xf32> to vector<32x1xf32>
    %cst_8 = arith.constant 6.400000e+01 : f32
    %19 = vector.broadcast %cst_8 : f32 to vector<32x1xf32>
    %20 = arith.divf %18, %19 : vector<32x1xf32>
    %21 = vector.broadcast %20 : vector<32x1xf32> to vector<32x64xf32>
    %22 = arith.subf %1, %21 : vector<32x64xf32>
    %23 = arith.mulf %22, %22 : vector<32x64xf32>
    %cst_9 = arith.constant dense<0.000000e+00> : vector<32xf32>
    %24 = vector.multi_reduction <add>, %23, %cst_9 [1] : vector<32x64xf32> to vector<32xf32>
    %25 = vector.shape_cast %24 : vector<32xf32> to vector<32x1xf32>
    %cst_10 = arith.constant 6.400000e+01 : f32
    %26 = vector.broadcast %cst_10 : f32 to vector<32x1xf32>
    %27 = arith.divf %25, %26 : vector<32x1xf32>
    %cst_11 = arith.constant 9.99999974E-6 : f32
    %28 = vector.broadcast %cst_11 : f32 to vector<32x1xf32>
    %29 = arith.addf %27, %28 : vector<32x1xf32>
    %30 = math.rsqrt %29 : vector<32x1xf32>
    %31 = vector.broadcast %30 : vector<32x1xf32> to vector<32x64xf32>
    %32 = arith.mulf %22, %31 : vector<32x64xf32>
    %c0_12 = arith.constant 0 : index
    %c0_13 = arith.constant 0 : index
    %33 = vector.load %arg3[%c0_12, %c0_13] : memref<32x1xf32, #tpu.memory_space<vmem>>, vector<32x1xf32>
    %34 = vector.broadcast %33 : vector<32x1xf32> to vector<32x64xf32>
    %35 = arith.mulf %32, %34 : vector<32x64xf32>
    %c0_14 = arith.constant 0 : index
    %c0_15 = arith.constant 0 : index
    %36 = vector.load %arg4[%c0_14, %c0_15] : memref<32x1xf32, #tpu.memory_space<vmem>>, vector<32x1xf32>
    %37 = vector.broadcast %36 : vector<32x1xf32> to vector<32x64xf32>
    %38 = arith.addf %35, %37 : vector<32x64xf32>
    %39 = arith.negf %38 : vector<32x64xf32>
    %40 = math.exp %39 : vector<32x64xf32>
    %cst_16 = arith.constant 1.000000e+00 : f32
    %41 = vector.broadcast %cst_16 : f32 to vector<32x64xf32>
    %42 = arith.addf %41, %40 : vector<32x64xf32>
    %43 = arith.divf %41, %42 : vector<32x64xf32>
    %44 = arith.mulf %38, %43 : vector<32x64xf32>
    %c0_17 = arith.constant 0 : index
    %c16 = arith.constant 16 : index
    %45 = vector.load %arg14[%c0_17, %c16] : memref<32x96xf32, #tpu.memory_space<vmem>>, vector<32x64xf32>
    tpu.vector_store %arg14[%c0_17, %c16], %44 {strides = array<i32>} : memref<32x96xf32, #tpu.memory_space<vmem>>, vector<32x64xf32>,
    %c0_18 = arith.constant 0 : index
    %c7 = arith.constant 7 : index
    %46 = vector.load %arg14[%c0_18, %c7] : memref<32x96xf32, #tpu.memory_space<vmem>>, vector<32x64xf32>
    %47 = vector.broadcast %12 : vector<1x64xf32> to vector<32x64xf32>
    %48 = arith.mulf %46, %47 : vector<32x64xf32>
    %c0_19 = arith.constant 0 : index
    %c8 = arith.constant 8 : index
    %49 = vector.load %arg14[%c0_19, %c8] : memref<32x96xf32, #tpu.memory_space<vmem>>, vector<32x64xf32>
    %c0_20 = arith.constant 0 : index
    %c9 = arith.constant 9 : index
    %50 = vector.load %arg14[%c0_20, %c9] : memref<32x96xf32, #tpu.memory_space<vmem>>, vector<32x64xf32>
    %51 = vector.broadcast %16 : vector<1x64xf32> to vector<32x64xf32>
    %52 = arith.mulf %50, %51 : vector<32x64xf32>
    %c0_21 = arith.constant 0 : index
    %c15 = arith.constant 15 : index
    %53 = vector.load %arg14[%c0_21, %c15] : memref<32x96xf32, #tpu.memory_space<vmem>>, vector<32x64xf32>
    %54 = vector.broadcast %12 : vector<1x64xf32> to vector<32x64xf32>
    %55 = arith.mulf %53, %54 : vector<32x64xf32>
    %c0_22 = arith.constant 0 : index
    %c17 = arith.constant 17 : index
    %56 = vector.load %arg14[%c0_22, %c17] : memref<32x96xf32, #tpu.memory_space<vmem>>, vector<32x64xf32>
    %57 = vector.broadcast %16 : vector<1x64xf32> to vector<32x64xf32>
    %58 = arith.mulf %56, %57 : vector<32x64xf32>
    %c0_23 = arith.constant 0 : index
    %c23 = arith.constant 23 : index
    %59 = vector.load %arg14[%c0_23, %c23] : memref<32x96xf32, #tpu.memory_space<vmem>>, vector<32x64xf32>
    %60 = vector.broadcast %12 : vector<1x64xf32> to vector<32x64xf32>
    %61 = arith.mulf %59, %60 : vector<32x64xf32>
    %c0_24 = arith.constant 0 : index
    %c24 = arith.constant 24 : index
    %62 = vector.load %arg14[%c0_24, %c24] : memref<32x96xf32, #tpu.memory_space<vmem>>, vector<32x64xf32>
    %c0_25 = arith.constant 0 : index
    %c25 = arith.constant 25 : index
    %63 = vector.load %arg14[%c0_25, %c25] : memref<32x96xf32, #tpu.memory_space<vmem>>, vector<32x64xf32>
    %64 = vector.broadcast %16 : vector<1x64xf32> to vector<32x64xf32>
    %65 = arith.mulf %63, %64 : vector<32x64xf32>
    %66 = tpu.concatenate %48, %49, %52, %55, %44, %58, %61, %62, %65 in 0 : vector<32x64xf32>, vector<32x64xf32>, vector<32x64xf32>, vector<32x64xf32>, vector<32x64xf32>, vector<32x64xf32>, vector<32x64xf32>, vector<32x64xf32>, vector<32x64xf32> -> vector<288x64xf32>
    %c0_26 = arith.constant 0 : index
    %c0_27 = arith.constant 0 : index
    %67 = vector.load %arg5[%c0_26, %c0_27] : memref<32x288xf32, #tpu.memory_space<vmem>>, vector<32x288xf32>
    %cst_28 = arith.constant dense<0.000000e+00> : vector<32x64xf32>
    %68 = tpu.matmul %67, %66, %cst_28 {dimension_numbers = #tpu.dot_dimension_numbers<[1], [0], [0], [1], [0, 0, 1, 1], [], []>} : vector<32x288xf32>, vector<288x64xf32>, vector<32x64xf32> -> vector<32x64xf32>
    %c0_29 = arith.constant 0 : index
    %c0_30 = arith.constant 0 : index
    %69 = vector.load %arg6[%c0_29, %c0_30] : memref<32x1xf32, #tpu.memory_space<vmem>>, vector<32x1xf32>
    %70 = vector.broadcast %69 : vector<32x1xf32> to vector<32x64xf32>
    %71 = arith.addf %68, %70 : vector<32x64xf32>
    %c0_31 = arith.constant 0 : index
    %c0_32 = arith.constant 0 : index
    %c0_33 = arith.constant 0 : index
    %72 = vector.load %arg2[%c0_31, %c0_32, %c0_33] : memref<1x1x16xf32, #tpu.memory_space<vmem>>, vector<1x1x16xf32>
    %73 = vector.shape_cast %72 : vector<1x1x16xf32> to vector<1x16xf32>
    %74 = arith.negf %73 : vector<1x16xf32>
    %75 = math.exp %74 : vector<1x16xf32>
    %cst_34 = arith.constant 1.000000e+00 : f32
    %76 = vector.broadcast %cst_34 : f32 to vector<1x16xf32>
    %77 = arith.addf %76, %75 : vector<1x16xf32>
    %78 = arith.divf %76, %77 : vector<1x16xf32>
    %79 = arith.mulf %73, %78 : vector<1x16xf32>
    %c0_35 = arith.constant 0 : index
    %c0_36 = arith.constant 0 : index
    %80 = vector.load %arg7[%c0_35, %c0_36] : memref<32x16xf32, #tpu.memory_space<vmem>>, vector<32x16xf32>
    %81 = vector.broadcast %79 : vector<1x16xf32> to vector<32x16xf32>
    %82 = arith.mulf %80, %81 : vector<32x16xf32>
    %cst_37 = arith.constant dense<0.000000e+00> : vector<32xf32>
    %83 = vector.multi_reduction <add>, %82, %cst_37 [1] : vector<32x16xf32> to vector<32xf32>
    %84 = vector.shape_cast %83 : vector<32xf32> to vector<32x1xf32>
    %c0_38 = arith.constant 0 : index
    %c0_39 = arith.constant 0 : index
    %85 = vector.load %arg8[%c0_38, %c0_39] : memref<32x1xf32, #tpu.memory_space<vmem>>, vector<32x1xf32>
    %86 = arith.addf %84, %85 : vector<32x1xf32>
    %87 = vector.broadcast %86 : vector<32x1xf32> to vector<32x64xf32>
    %88 = arith.addf %71, %87 : vector<32x64xf32>
    %cst_40 = arith.constant dense<0.000000e+00> : vector<32xf32>
    %89 = vector.multi_reduction <add>, %88, %cst_40 [1] : vector<32x64xf32> to vector<32xf32>
    %90 = vector.shape_cast %89 : vector<32xf32> to vector<32x1xf32>
    %cst_41 = arith.constant 6.400000e+01 : f32
    %91 = vector.broadcast %cst_41 : f32 to vector<32x1xf32>
    %92 = arith.divf %90, %91 : vector<32x1xf32>
    %93 = vector.broadcast %92 : vector<32x1xf32> to vector<32x64xf32>
    %94 = arith.subf %88, %93 : vector<32x64xf32>
    %95 = arith.mulf %94, %94 : vector<32x64xf32>
    %cst_42 = arith.constant dense<0.000000e+00> : vector<32xf32>
    %96 = vector.multi_reduction <add>, %95, %cst_42 [1] : vector<32x64xf32> to vector<32xf32>
    %97 = vector.shape_cast %96 : vector<32xf32> to vector<32x1xf32>
    %cst_43 = arith.constant 6.400000e+01 : f32
    %98 = vector.broadcast %cst_43 : f32 to vector<32x1xf32>
    %99 = arith.divf %97, %98 : vector<32x1xf32>
    %cst_44 = arith.constant 9.99999974E-6 : f32
    %100 = vector.broadcast %cst_44 : f32 to vector<32x1xf32>
    %101 = arith.addf %99, %100 : vector<32x1xf32>
    %102 = math.rsqrt %101 : vector<32x1xf32>
    %103 = vector.broadcast %102 : vector<32x1xf32> to vector<32x64xf32>
    %104 = arith.mulf %94, %103 : vector<32x64xf32>
    %c0_45 = arith.constant 0 : index
    %c0_46 = arith.constant 0 : index
    %105 = vector.load %arg9[%c0_45, %c0_46] : memref<32x1xf32, #tpu.memory_space<vmem>>, vector<32x1xf32>
    %106 = vector.broadcast %105 : vector<32x1xf32> to vector<32x64xf32>
    %107 = arith.mulf %104, %106 : vector<32x64xf32>
    %c0_47 = arith.constant 0 : index
    %c0_48 = arith.constant 0 : index
    %108 = vector.load %arg10[%c0_47, %c0_48] : memref<32x1xf32, #tpu.memory_space<vmem>>, vector<32x1xf32>
    %109 = vector.broadcast %108 : vector<32x1xf32> to vector<32x64xf32>
    %110 = arith.addf %107, %109 : vector<32x64xf32>
    %111 = arith.negf %110 : vector<32x64xf32>
    %112 = math.exp %111 : vector<32x64xf32>
    %cst_49 = arith.constant 1.000000e+00 : f32
    %113 = vector.broadcast %cst_49 : f32 to vector<32x64xf32>
    %114 = arith.addf %113, %112 : vector<32x64xf32>
    %115 = arith.divf %113, %114 : vector<32x64xf32>
    %116 = arith.mulf %110, %115 : vector<32x64xf32>
    %c0_50 = arith.constant 0 : index
    %c16_51 = arith.constant 16 : index
    %117 = vector.load %arg14[%c0_50, %c16_51] : memref<32x96xf32, #tpu.memory_space<vmem>>, vector<32x64xf32>
    tpu.vector_store %arg14[%c0_50, %c16_51], %116 {strides = array<i32>} : memref<32x96xf32, #tpu.memory_space<vmem>>, vector<32x64xf32>,
    %c0_52 = arith.constant 0 : index
    %c7_53 = arith.constant 7 : index
    %118 = vector.load %arg14[%c0_52, %c7_53] : memref<32x96xf32, #tpu.memory_space<vmem>>, vector<32x64xf32>
    %119 = vector.broadcast %12 : vector<1x64xf32> to vector<32x64xf32>
    %120 = arith.mulf %118, %119 : vector<32x64xf32>
    %c0_54 = arith.constant 0 : index
    %c8_55 = arith.constant 8 : index
    %121 = vector.load %arg14[%c0_54, %c8_55] : memref<32x96xf32, #tpu.memory_space<vmem>>, vector<32x64xf32>
    %c0_56 = arith.constant 0 : index
    %c9_57 = arith.constant 9 : index
    %122 = vector.load %arg14[%c0_56, %c9_57] : memref<32x96xf32, #tpu.memory_space<vmem>>, vector<32x64xf32>
    %123 = vector.broadcast %16 : vector<1x64xf32> to vector<32x64xf32>
    %124 = arith.mulf %122, %123 : vector<32x64xf32>
    %c0_58 = arith.constant 0 : index
    %c15_59 = arith.constant 15 : index
    %125 = vector.load %arg14[%c0_58, %c15_59] : memref<32x96xf32, #tpu.memory_space<vmem>>, vector<32x64xf32>
    %126 = vector.broadcast %12 : vector<1x64xf32> to vector<32x64xf32>
    %127 = arith.mulf %125, %126 : vector<32x64xf32>
    %c0_60 = arith.constant 0 : index
    %c17_61 = arith.constant 17 : index
    %128 = vector.load %arg14[%c0_60, %c17_61] : memref<32x96xf32, #tpu.memory_space<vmem>>, vector<32x64xf32>
    %129 = vector.broadcast %16 : vector<1x64xf32> to vector<32x64xf32>
    %130 = arith.mulf %128, %129 : vector<32x64xf32>
    %c0_62 = arith.constant 0 : index
    %c23_63 = arith.constant 23 : index
    %131 = vector.load %arg14[%c0_62, %c23_63] : memref<32x96xf32, #tpu.memory_space<vmem>>, vector<32x64xf32>
    %132 = vector.broadcast %12 : vector<1x64xf32> to vector<32x64xf32>
    %133 = arith.mulf %131, %132 : vector<32x64xf32>
    %c0_64 = arith.constant 0 : index
    %c24_65 = arith.constant 24 : index
    %134 = vector.load %arg14[%c0_64, %c24_65] : memref<32x96xf32, #tpu.memory_space<vmem>>, vector<32x64xf32>
    %c0_66 = arith.constant 0 : index
    %c25_67 = arith.constant 25 : index
    %135 = vector.load %arg14[%c0_66, %c25_67] : memref<32x96xf32, #tpu.memory_space<vmem>>, vector<32x64xf32>
    %136 = vector.broadcast %16 : vector<1x64xf32> to vector<32x64xf32>
    %137 = arith.mulf %135, %136 : vector<32x64xf32>
    %138 = tpu.concatenate %120, %121, %124, %127, %116, %130, %133, %134, %137 in 0 : vector<32x64xf32>, vector<32x64xf32>, vector<32x64xf32>, vector<32x64xf32>, vector<32x64xf32>, vector<32x64xf32>, vector<32x64xf32>, vector<32x64xf32>, vector<32x64xf32> -> vector<288x64xf32>
    %c0_68 = arith.constant 0 : index
    %c0_69 = arith.constant 0 : index
    %139 = vector.load %arg11[%c0_68, %c0_69] : memref<32x288xf32, #tpu.memory_space<vmem>>, vector<32x288xf32>
    %cst_70 = arith.constant dense<0.000000e+00> : vector<32x64xf32>
    %140 = tpu.matmul %139, %138, %cst_70 {dimension_numbers = #tpu.dot_dimension_numbers<[1], [0], [0], [1], [0, 0, 1, 1], [], []>} : vector<32x288xf32>, vector<288x64xf32>, vector<32x64xf32> -> vector<32x64xf32>
    %c0_71 = arith.constant 0 : index
    %c0_72 = arith.constant 0 : index
    %141 = vector.load %arg12[%c0_71, %c0_72] : memref<32x1xf32, #tpu.memory_space<vmem>>, vector<32x1xf32>
    %142 = vector.broadcast %141 : vector<32x1xf32> to vector<32x64xf32>
    %143 = arith.addf %140, %142 : vector<32x64xf32>
    %144 = arith.addf %143, %1 : vector<32x64xf32>
    %c0_73 = arith.constant 0 : index
    %c0_74 = arith.constant 0 : index
    %c0_75 = arith.constant 0 : index
    %145 = vector.load %arg13[%c0_73, %c0_74, %c0_75] : memref<1x32x64xf32, #tpu.memory_space<vmem>>, vector<1x32x64xf32>
    %146 = vector.shape_cast %145 : vector<1x32x64xf32> to vector<32x64xf32>
    %147 = vector.shape_cast %144 : vector<32x64xf32> to vector<1x32x64xf32>
    tpu.vector_store %arg13[%c0_73, %c0_74, %c0_75], %147 {strides = array<i32>} : memref<1x32x64xf32, #tpu.memory_space<vmem>>, vector<1x32x64xf32>,
    return
  }
  func.func @transform_0(%arg0: i32) -> (i32, i32, i32) {
    %c0_i32 = arith.constant 0 : i32
    %c0_i32_0 = arith.constant 0 : i32
    %c0_i32_1 = arith.constant 0 : i32
    return %arg0, %c0_i32, %c0_i32_0 : i32, i32, i32
  }
  func.func @transform_1(%arg0: i32) -> (i32, i32, i32) {
    %c0_i32 = arith.constant 0 : i32
    %c0_i32_0 = arith.constant 0 : i32
    %c0_i32_1 = arith.constant 0 : i32
    return %arg0, %c0_i32, %c0_i32_0 : i32, i32, i32
  }
  func.func @transform_2(%arg0: i32) -> (i32, i32) {
    %c0_i32 = arith.constant 0 : i32
    %c0_i32_0 = arith.constant 0 : i32
    %c0_i32_1 = arith.constant 0 : i32
    return %c0_i32, %c0_i32_0 : i32, i32
  }
  func.func @transform_3(%arg0: i32) -> (i32, i32) {
    %c0_i32 = arith.constant 0 : i32
    %c0_i32_0 = arith.constant 0 : i32
    %c0_i32_1 = arith.constant 0 : i32
    return %c0_i32, %c0_i32_0 : i32, i32
  }
  func.func @transform_4(%arg0: i32) -> (i32, i32) {
    %c0_i32 = arith.constant 0 : i32
    %c0_i32_0 = arith.constant 0 : i32
    %c0_i32_1 = arith.constant 0 : i32
    return %c0_i32, %c0_i32_0 : i32, i32
  }
  func.func @transform_5(%arg0: i32) -> (i32, i32) {
    %c0_i32 = arith.constant 0 : i32
    %c0_i32_0 = arith.constant 0 : i32
    %c0_i32_1 = arith.constant 0 : i32
    return %c0_i32, %c0_i32_0 : i32, i32
  }
  func.func @transform_6(%arg0: i32) -> (i32, i32) {
    %c0_i32 = arith.constant 0 : i32
    %c0_i32_0 = arith.constant 0 : i32
    %c0_i32_1 = arith.constant 0 : i32
    return %c0_i32, %c0_i32_0 : i32, i32
  }
  func.func @transform_7(%arg0: i32) -> (i32, i32) {
    %c0_i32 = arith.constant 0 : i32
    %c0_i32_0 = arith.constant 0 : i32
    %c0_i32_1 = arith.constant 0 : i32
    return %c0_i32, %c0_i32_0 : i32, i32
  }
  func.func @transform_8(%arg0: i32) -> (i32, i32) {
    %c0_i32 = arith.constant 0 : i32
    %c0_i32_0 = arith.constant 0 : i32
    %c0_i32_1 = arith.constant 0 : i32
    return %c0_i32, %c0_i32_0 : i32, i32
  }
  func.func @transform_9(%arg0: i32) -> (i32, i32) {
    %c0_i32 = arith.constant 0 : i32
    %c0_i32_0 = arith.constant 0 : i32
    %c0_i32_1 = arith.constant 0 : i32
    return %c0_i32, %c0_i32_0 : i32, i32
  }
  func.func @transform_10(%arg0: i32) -> (i32, i32) {
    %c0_i32 = arith.constant 0 : i32
    %c0_i32_0 = arith.constant 0 : i32
    %c0_i32_1 = arith.constant 0 : i32
    return %c0_i32, %c0_i32_0 : i32, i32
  }
  func.func @transform_11(%arg0: i32) -> (i32, i32) {
    %c0_i32 = arith.constant 0 : i32
    %c0_i32_0 = arith.constant 0 : i32
    %c0_i32_1 = arith.constant 0 : i32
    return %c0_i32, %c0_i32_0 : i32, i32
  }
  func.func @transform_12(%arg0: i32) -> (i32, i32, i32) {
    %c0_i32 = arith.constant 0 : i32
    %c0_i32_0 = arith.constant 0 : i32
    %c0_i32_1 = arith.constant 0 : i32
    return %arg0, %c0_i32, %c0_i32_0 : i32, i32, i32
  }
}

</mosaic_0001>

<llo_original>
// kernel: _resblock_forward_impl.1
$region0: #{_resblock_forward_impl.1}
  #allocation0 [shape = 'u32[]', space=smem, size = 0x4, offset = 0x4, fixed_abs, tag = 'smem constant byte address 0x4 - core index']
  #allocation1 [shape = 'u32[144,128]{1,0:T(1,128)}', space=vmem, size = 0x12000, scoped, tag = 'internal scratch']
  #allocation2 [shape = 'f32[32,96]{1,0:T(8,128)}', space=vmem, size = 0x4000, scoped, tag = 'scratch operand']
  %s0 = inlined_call_operand.vmem [shape: f32[2,32,64], index: 0, kind: input, shape index: {}]
  %s1 = inlined_call_operand.vmem [shape: f32[2,1,16], index: 1, kind: input, shape index: {}]
  %s2 = inlined_call_operand.vmem [shape: f32[32,1], index: 2, kind: input, shape index: {}]
  %s3 = inlined_call_operand.vmem [shape: f32[32,1], index: 3, kind: input, shape index: {}]
  %s4 = inlined_call_operand.vmem [shape: f32[32,288], index: 4, kind: input, shape index: {}]
  %s5 = inlined_call_operand.vmem [shape: f32[32,1], index: 5, kind: input, shape index: {}]
  %s6 = inlined_call_operand.vmem [shape: f32[32,16], index: 6, kind: input, shape index: {}]
  %s7 = inlined_call_operand.vmem [shape: f32[32,1], index: 7, kind: input, shape index: {}]
  %s8 = inlined_call_operand.vmem [shape: f32[32,1], index: 8, kind: input, shape index: {}]
  %s9 = inlined_call_operand.vmem [shape: f32[32,1], index: 9, kind: input, shape index: {}]
  %s10 = inlined_call_operand.vmem [shape: f32[32,288], index: 10, kind: input, shape index: {}]
  %s11 = inlined_call_operand.vmem [shape: f32[32,1], index: 11, kind: input, shape index: {}]
  %s12 = inlined_call_operand.vmem [shape: f32[2,32,64], index: 12, kind: output, shape index: {}]
  %s13 = sld [smem:[#allocation0]]
  $region81: #{_resblock_forward_impl.1} parent=0
    _
  %s15 = ssub.s32 1, %s13
  %s16 = scalar_select 0, %s15, %s13
  loop: start=0, step=1, limit=4
  $region2: #{_resblock_forward_impl.1} parent=0 // loop_pre_header
    _
  $region3: #{_resblock_forward_impl.1} parent=0 // loop_header
    %s18 = sphi 0, %s22
    %p19 = scmp.ge.s32.totalorder %s18, 4
    %s28 = sphi 0, %s30
    %s31 = sphi 0, %s28
    %s32 = sphi 0, %s31
    %s48 = sphi 0, %s32
    %s54 = sphi 0, %s56
    %s57 = sphi 0, %s54
    %s58 = sphi 0, %s57
    %s74 = sphi 0, %s58
    %s78 = sphi 0, %s78
    %s80 = sphi 0, %s78
    %s81 = sphi 0, %s80
    %s95 = sphi 0, %s81
    %s99 = sphi 0, %s99
    %s101 = sphi 0, %s99
    %s102 = sphi 0, %s101
    %s116 = sphi 0, %s102
    %s120 = sphi 0, %s120
    %s122 = sphi 0, %s120
    %s123 = sphi 0, %s122
    %s137 = sphi 0, %s123
    %s141 = sphi 0, %s141
    %s143 = sphi 0, %s141
    %s144 = sphi 0, %s143
    %s158 = sphi 0, %s144
    %s162 = sphi 0, %s162
    %s164 = sphi 0, %s162
    %s165 = sphi 0, %s164
    %s179 = sphi 0, %s165
    %s183 = sphi 0, %s183
    %s185 = sphi 0, %s183
    %s186 = sphi 0, %s185
    %s200 = sphi 0, %s186
    %s204 = sphi 0, %s204
    %s206 = sphi 0, %s204
    %s207 = sphi 0, %s206
    %s221 = sphi 0, %s207
    %s225 = sphi 0, %s225
    %s227 = sphi 0, %s225
    %s228 = sphi 0, %s227
    %s242 = sphi 0, %s228
    %s246 = sphi 0, %s246
    %s248 = sphi 0, %s246
    %s249 = sphi 0, %s248
    %s263 = sphi 0, %s249
    %s267 = sphi 0, %s267
    %s269 = sphi 0, %s267
    %s270 = sphi 0, %s269
    %s284 = sphi 0, %s270
    %s290 = sphi 0, %s292
    %s293 = sphi 0, %s290
    %s294 = sphi 0, %s293
    %s310 = sphi 0, %s294
  $region4: #{_resblock_forward_impl.1} parent=0 // loop_header_branch
    %21 = sbr.rel (%p19) target = $region8
  $region5: #{_resblock_forward_impl.1} parent=0 // loop_body
    %s23 = ssub.s32 %s18, 1
    %s24 = ssub.s32 %s18, 2
    %s25 = sadd.s32 %s18, 1
    %s26 = ssub.s32 %s18, %s25
    %p27 = scmp.eq.s32.totalorder %s26, 0
    %s29 = sadd.s32 %s28, 1
    %s30 = scalar_select %p27, %s28, %s29
    %p33 = pneg %p27
    %p34 = scmp.eq.s32.totalorder %s18, 1
    %p35 = por %p33, %p34
    %p36 = scmp.ne.s32.totalorder %s28, %s31
    %p37 = scmp.eq.s32.totalorder %s18, 0
    %p38 = por %p36, %p37
    %p39 = scmp.ne.s32.totalorder %s28, %s31
    %p40 = scmp.eq.s32.totalorder %s23, 1
    %p41 = por %p39, %p40
    %p42 = scmp.ne.s32.totalorder %s31, %s32
    %p43 = scmp.eq.s32.totalorder %s23, 0
    %p44 = por %p42, %p43
    %p45 = scmp.ne.s32.totalorder %s31, %s32
    %p46 = scmp.eq.s32.totalorder %s24, 1
    %p47 = por %p45, %p46
    %p49 = scmp.ne.s32.totalorder %s32, %s48
    %p50 = scmp.eq.s32.totalorder %s24, 0
    %p51 = por %p49, %p50
    %s52 = ssub.s32 %s18, %s25
    %p53 = scmp.eq.s32.totalorder %s52, 0
    %s55 = sadd.s32 %s54, 1
    %s56 = scalar_select %p53, %s54, %s55
    %p59 = pneg %p53
    %p60 = scmp.eq.s32.totalorder %s18, 1
    %p61 = por %p59, %p60
    %p62 = scmp.ne.s32.totalorder %s54, %s57
    %p63 = scmp.eq.s32.totalorder %s18, 0
    %p64 = por %p62, %p63
    %p65 = scmp.ne.s32.totalorder %s54, %s57
    %p66 = scmp.eq.s32.totalorder %s23, 1
    %p67 = por %p65, %p66
    %p68 = scmp.ne.s32.totalorder %s57, %s58
    %p69 = scmp.eq.s32.totalorder %s23, 0
    %p70 = por %p68, %p69
    %p71 = scmp.ne.s32.totalorder %s57, %s58
    %p72 = scmp.eq.s32.totalorder %s24, 1
    %p73 = por %p71, %p72
    %p75 = scmp.ne.s32.totalorder %s58, %s74
    %p76 = scmp.eq.s32.totalorder %s24, 0
    %p77 = por %p75, %p76
    %s79 = sadd.s32 %s78, 1
    %p82 = scmp.eq.s32.totalorder %s18, 1
    %p83 = scmp.ne.s32.totalorder %s78, %s80
    %p84 = scmp.eq.s32.totalorder %s18, 0
    %p85 = por %p83, %p84
    %p86 = scmp.ne.s32.totalorder %s78, %s80
    %p87 = scmp.eq.s32.totalorder %s23, 1
    %p88 = por %p86, %p87
    %p89 = scmp.ne.s32.totalorder %s80, %s81
    %p90 = scmp.eq.s32.totalorder %s23, 0
    %p91 = por %p89, %p90
    %p92 = scmp.ne.s32.totalorder %s80, %s81
    %p93 = scmp.eq.s32.totalorder %s24, 1
    %p94 = por %p92, %p93
    %p96 = scmp.ne.s32.totalorder %s81, %s95
    %p97 = scmp.eq.s32.totalorder %s24, 0
    %p98 = por %p96, %p97
    %s100 = sadd.s32 %s99, 1
    %p103 = scmp.eq.s32.totalorder %s18, 1
    %p104 = scmp.ne.s32.totalorder %s99, %s101
    %p105 = scmp.eq.s32.totalorder %s18, 0
    %p106 = por %p104, %p105
    %p107 = scmp.ne.s32.totalorder %s99, %s101
    %p108 = scmp.eq.s32.totalorder %s23, 1
    %p109 = por %p107, %p108
    %p110 = scmp.ne.s32.totalorder %s101, %s102
    %p111 = scmp.eq.s32.totalorder %s23, 0
    %p112 = por %p110, %p111
    %p113 = scmp.ne.s32.totalorder %s101, %s102
    %p114 = scmp.eq.s32.totalorder %s24, 1
    %p115 = por %p113, %p114
    %p117 = scmp.ne.s32.totalorder %s102, %s116
    %p118 = scmp.eq.s32.totalorder %s24, 0
    %p119 = por %p117, %p118
    %s121 = sadd.s32 %s120, 1
    %p124 = scmp.eq.s32.totalorder %s18, 1
    %p125 = scmp.ne.s32.totalorder %s120, %s122
    %p126 = scmp.eq.s32.totalorder %s18, 0
    %p127 = por %p125, %p126
    %p128 = scmp.ne.s32.totalorder %s120, %s122
    %p129 = scmp.eq.s32.totalorder %s23, 1
    %p130 = por %p128, %p129
    %p131 = scmp.ne.s32.totalorder %s122, %s123
    %p132 = scmp.eq.s32.totalorder %s23, 0
    %p133 = por %p131, %p132
    %p134 = scmp.ne.s32.totalorder %s122, %s123
    %p135 = scmp.eq.s32.totalorder %s24, 1
    %p136 = por %p134, %p135
    %p138 = scmp.ne.s32.totalorder %s123, %s137
    %p139 = scmp.eq.s32.totalorder %s24, 0
    %p140 = por %p138, %p139
    %s142 = sadd.s32 %s141, 1
    %p145 = scmp.eq.s32.totalorder %s18, 1
    %p146 = scmp.ne.s32.totalorder %s141, %s143
    %p147 = scmp.eq.s32.totalorder %s18, 0
    %p148 = por %p146, %p147
    %p149 = scmp.ne.s32.totalorder %s141, %s143
    %p150 = scmp.eq.s32.totalorder %s23, 1
    %p151 = por %p149, %p150
    %p152 = scmp.ne.s32.totalorder %s143, %s144
    %p153 = scmp.eq.s32.totalorder %s23, 0
    %p154 = por %p152, %p153
    %p155 = scmp.ne.s32.totalorder %s143, %s144
    %p156 = scmp.eq.s32.totalorder %s24, 1
    %p157 = por %p155, %p156
    %p159 = scmp.ne.s32.totalorder %s144, %s158
    %p160 = scmp.eq.s32.totalorder %s24, 0
    %p161 = por %p159, %p160
    %s163 = sadd.s32 %s162, 1
    %p166 = scmp.eq.s32.totalorder %s18, 1
    %p167 = scmp.ne.s32.totalorder %s162, %s164
    %p168 = scmp.eq.s32.totalorder %s18, 0
    %p169 = por %p167, %p168
    %p170 = scmp.ne.s32.totalorder %s162, %s164
    %p171 = scmp.eq.s32.totalorder %s23, 1
    %p172 = por %p170, %p171
    %p173 = scmp.ne.s32.totalorder %s164, %s165
    %p174 = scmp.eq.s32.totalorder %s23, 0
    %p175 = por %p173, %p174
    %p176 = scmp.ne.s32.totalorder %s164, %s165
    %p177 = scmp.eq.s32.totalorder %s24, 1
    %p178 = por %p176, %p177
    %p180 = scmp.ne.s32.totalorder %s165, %s179
    %p181 = scmp.eq.s32.totalorder %s24, 0
    %p182 = por %p180, %p181
    %s184 = sadd.s32 %s183, 1
    %p187 = scmp.eq.s32.totalorder %s18, 1
    %p188 = scmp.ne.s32.totalorder %s183, %s185
    %p189 = scmp.eq.s32.totalorder %s18, 0
    %p190 = por %p188, %p189
    %p191 = scmp.ne.s32.totalorder %s183, %s185
    %p192 = scmp.eq.s32.totalorder %s23, 1
    %p193 = por %p191, %p192
    %p194 = scmp.ne.s32.totalorder %s185, %s186
    %p195 = scmp.eq.s32.totalorder %s23, 0
    %p196 = por %p194, %p195
    %p197 = scmp.ne.s32.totalorder %s185, %s186
    %p198 = scmp.eq.s32.totalorder %s24, 1
    %p199 = por %p197, %p198
    %p201 = scmp.ne.s32.totalorder %s186, %s200
    %p202 = scmp.eq.s32.totalorder %s24, 0
    %p203 = por %p201, %p202
    %s205 = sadd.s32 %s204, 1
    %p208 = scmp.eq.s32.totalorder %s18, 1
    %p209 = scmp.ne.s32.totalorder %s204, %s206
    %p210 = scmp.eq.s32.totalorder %s18, 0
    %p211 = por %p209, %p210
    %p212 = scmp.ne.s32.totalorder %s204, %s206
    %p213 = scmp.eq.s32.totalorder %s23, 1
    %p214 = por %p212, %p213
    %p215 = scmp.ne.s32.totalorder %s206, %s207
    %p216 = scmp.eq.s32.totalorder %s23, 0
    %p217 = por %p215, %p216
    %p218 = scmp.ne.s32.totalorder %s206, %s207
    %p219 = scmp.eq.s32.totalorder %s24, 1
    %p220 = por %p218, %p219
    %p222 = scmp.ne.s32.totalorder %s207, %s221
    %p223 = scmp.eq.s32.totalorder %s24, 0
    %p224 = por %p222, %p223
    %s226 = sadd.s32 %s225, 1
    %p229 = scmp.eq.s32.totalorder %s18, 1
    %p230 = scmp.ne.s32.totalorder %s225, %s227
    %p231 = scmp.eq.s32.totalorder %s18, 0
    %p232 = por %p230, %p231
    %p233 = scmp.ne.s32.totalorder %s225, %s227
    %p234 = scmp.eq.s32.totalorder %s23, 1
    %p235 = por %p233, %p234
    %p236 = scmp.ne.s32.totalorder %s227, %s228
    %p237 = scmp.eq.s32.totalorder %s23, 0
    %p238 = por %p236, %p237
    %p239 = scmp.ne.s32.totalorder %s227, %s228
    %p240 = scmp.eq.s32.totalorder %s24, 1
    %p241 = por %p239, %p240
    %p243 = scmp.ne.s32.totalorder %s228, %s242
    %p244 = scmp.eq.s32.totalorder %s24, 0
    %p245 = por %p243, %p244
    %s247 = sadd.s32 %s246, 1
    %p250 = scmp.eq.s32.totalorder %s18, 1
    %p251 = scmp.ne.s32.totalorder %s246, %s248
    %p252 = scmp.eq.s32.totalorder %s18, 0
    %p253 = por %p251, %p252
    %p254 = scmp.ne.s32.totalorder %s246, %s248
    %p255 = scmp.eq.s32.totalorder %s23, 1
    %p256 = por %p254, %p255
    %p257 = scmp.ne.s32.totalorder %s248, %s249
    %p258 = scmp.eq.s32.totalorder %s23, 0
    %p259 = por %p257, %p258
    %p260 = scmp.ne.s32.totalorder %s248, %s249
    %p261 = scmp.eq.s32.totalorder %s24, 1
    %p262 = por %p260, %p261
    %p264 = scmp.ne.s32.totalorder %s249, %s263
    %p265 = scmp.eq.s32.totalorder %s24, 0
    %p266 = por %p264, %p265
    %s268 = sadd.s32 %s267, 1
    %p271 = scmp.eq.s32.totalorder %s18, 1
    %p272 = scmp.ne.s32.totalorder %s267, %s269
    %p273 = scmp.eq.s32.totalorder %s18, 0
    %p274 = por %p272, %p273
    %p275 = scmp.ne.s32.totalorder %s267, %s269
    %p276 = scmp.eq.s32.totalorder %s23, 1
    %p277 = por %p275, %p276
    %p278 = scmp.ne.s32.totalorder %s269, %s270
    %p279 = scmp.eq.s32.totalorder %s23, 0
    %p280 = por %p278, %p279
    %p281 = scmp.ne.s32.totalorder %s269, %s270
    %p282 = scmp.eq.s32.totalorder %s24, 1
    %p283 = por %p281, %p282
    %p285 = scmp.ne.s32.totalorder %s270, %s284
    %p286 = scmp.eq.s32.totalorder %s24, 0
    %p287 = por %p285, %p286
    %s288 = ssub.s32 %s18, %s25
    %p289 = scmp.eq.s32.totalorder %s288, 0
    %s291 = sadd.s32 %s290, 1
    %s292 = scalar_select %p289, %s290, %s291
    %p295 = pneg %p289
    %p296 = scmp.eq.s32.totalorder %s18, 1
    %p297 = por %p295, %p296
    %p298 = scmp.ne.s32.totalorder %s290, %s293
    %p299 = scmp.eq.s32.totalorder %s18, 0
    %p300 = por %p298, %p299
    %p301 = scmp.ne.s32.totalorder %s290, %s293
    %p302 = scmp.eq.s32.totalorder %s23, 1
    %p303 = por %p301, %p302
    %p304 = scmp.ne.s32.totalorder %s293, %s294
    %p305 = scmp.eq.s32.totalorder %s23, 0
    %p306 = por %p304, %p305
    %p307 = scmp.ne.s32.totalorder %s293, %s294
    %p308 = scmp.eq.s32.totalorder %s24, 1
    %p309 = por %p307, %p308
    %p311 = scmp.ne.s32.totalorder %s294, %s310
    %p312 = scmp.eq.s32.totalorder %s24, 0
    %p313 = por %p311, %p312
    %p314 = scmp.le.s32.totalorder 1, %s18
    %p315 = scmp.lt.s32.totalorder %s18, 3
    %p316 = pnand %p314, %p315
    %p317 = pneg %p316
    // Predicated region
    $region9: #{_resblock_forward_impl.1} parent=5 // pred_check
      _
    $region10: #{_resblock_forward_impl.1} parent=5 // pred_check_branch
      %319 = sbr.rel (%p316) target = $region12
    $region11: #{_resblock_forward_impl.1} parent=5 // pred_region
      %s320 = ssub.s32 %s18, 1
      // Predicated region
      $region13: #{_resblock_forward_impl.1} parent=11 // pred_check
        %p321 = pneg %p91
      $region14: #{_resblock_forward_impl.1} parent=11 // pred_check_branch
        %323 = sbr.rel (%p321) target = $region16
      $region15: #{_resblock_forward_impl.1} parent=11 // pred_region
        _
      $region16: #{_resblock_forward_impl.1} parent=11 // pred_fallthru
        _
      // Predicated region
      $region17: #{_resblock_forward_impl.1} parent=11 // pred_check
        %p324 = pneg %p112
      $region18: #{_resblock_forward_impl.1} parent=11 // pred_check_branch
        %326 = sbr.rel (%p324) target = $region20
      $region19: #{_resblock_forward_impl.1} parent=11 // pred_region
        _
      $region20: #{_resblock_forward_impl.1} parent=11 // pred_fallthru
        _
      // Predicated region
      $region21: #{_resblock_forward_impl.1} parent=11 // pred_check
        %p327 = pneg %p133
      $region22: #{_resblock_forward_impl.1} parent=11 // pred_check_branch
        %329 = sbr.rel (%p327) target = $region24
      $region23: #{_resblock_forward_impl.1} parent=11 // pred_region
        _
      $region24: #{_resblock_forward_impl.1} parent=11 // pred_fallthru
        _
      // Predicated region
      $region25: #{_resblock_forward_impl.1} parent=11 // pred_check
        %p330 = pneg %p154
      $region26: #{_resblock_forward_impl.1} parent=11 // pred_check_branch
        %332 = sbr.rel (%p330) target = $region28
      $region27: #{_resblock_forward_impl.1} parent=11 // pred_region
        _
      $region28: #{_resblock_forward_impl.1} parent=11 // pred_fallthru
        _
      // Predicated region
      $region29: #{_resblock_forward_impl.1} parent=11 // pred_check
        %p333 = pneg %p175
      $region30: #{_resblock_forward_impl.1} parent=11 // pred_check_branch
        %335 = sbr.rel (%p333) target = $region32
      $region31: #{_resblock_forward_impl.1} parent=11 // pred_region
        _
      $region32: #{_resblock_forward_impl.1} parent=11 // pred_fallthru
        _
      // Predicated region
      $region33: #{_resblock_forward_impl.1} parent=11 // pred_check
        %p336 = pneg %p196
      $region34: #{_resblock_forward_impl.1} parent=11 // pred_check_branch
        %338 = sbr.rel (%p336) target = $region36
      $region35: #{_resblock_forward_impl.1} parent=11 // pred_region
        _
      $region36: #{_resblock_forward_impl.1} parent=11 // pred_fallthru
        _
      // Predicated region
      $region37: #{_resblock_forward_impl.1} parent=11 // pred_check
        %p339 = pneg %p217
      $region38: #{_resblock_forward_impl.1} parent=11 // pred_check_branch
        %341 = sbr.rel (%p339) target = $region40
      $region39: #{_resblock_forward_impl.1} parent=11 // pred_region
        _
      $region40: #{_resblock_forward_impl.1} parent=11 // pred_fallthru
        _
      // Predicated region
      $region41: #{_resblock_forward_impl.1} parent=11 // pred_check
        %p342 = pneg %p238
      $region42: #{_resblock_forward_impl.1} parent=11 // pred_check_branch
        %344 = sbr.rel (%p342) target = $region44
      $region43: #{_resblock_forward_impl.1} parent=11 // pred_region
        _
      $region44: #{_resblock_forward_impl.1} parent=11 // pred_fallthru
        _
      // Predicated region
      $region45: #{_resblock_forward_impl.1} parent=11 // pred_check
        %p345 = pneg %p259
      $region46: #{_resblock_forward_impl.1} parent=11 // pred_check_branch
        %347 = sbr.rel (%p345) target = $region48
      $region47: #{_resblock_forward_impl.1} parent=11 // pred_region
        _
      $region48: #{_resblock_forward_impl.1} parent=11 // pred_fallthru
        _
      // Predicated region
      $region49: #{_resblock_forward_impl.1} parent=11 // pred_check
        %p348 = pneg %p280
      $region50: #{_resblock_forward_impl.1} parent=11 // pred_check_branch
        %350 = sbr.rel (%p348) target = $region52
      $region51: #{_resblock_forward_impl.1} parent=11 // pred_region
        _
      $region52: #{_resblock_forward_impl.1} parent=11 // pred_fallthru
        _
    $region12: #{_resblock_forward_impl.1} parent=5 // pred_fallthru
      _
    %p351 = scmp.lt.s32.totalorder %s18, 2
    // Predicated region
    $region53: #{_resblock_forward_impl.1} parent=5 // pred_check
      %p352 = pneg %p351
    $region54: #{_resblock_forward_impl.1} parent=5 // pred_check_branch
      %354 = sbr.rel (%p352) target = $region56
    $region55: #{_resblock_forward_impl.1} parent=5 // pred_region
      // Predicated region
      $region57: #{_resblock_forward_impl.1} parent=55 // pred_check
        %p355 = pneg %p38
      $region58: #{_resblock_forward_impl.1} parent=55 // pred_check_branch
        %357 = sbr.rel (%p355) target = $region60
      $region59: #{_resblock_forward_impl.1} parent=55 // pred_region
        %p358 = scmp.lt.s32.totalorder %s18, 1
        %s359 = scalar_select %p358, %s18, 1
        %s360 = smul.addr %s359, 4
        %s361 = smul.addr %s360, 8
        %s362 = scalar_lea.vmem %s0, %s361
      $region60: #{_resblock_forward_impl.1} parent=55 // pred_fallthru
        _
      // Predicated region
      $region61: #{_resblock_forward_impl.1} parent=55 // pred_check
        %p363 = pneg %p64
      $region62: #{_resblock_forward_impl.1} parent=55 // pred_check_branch
        %365 = sbr.rel (%p363) target = $region64
      $region63: #{_resblock_forward_impl.1} parent=55 // pred_region
        %p366 = scmp.lt.s32.totalorder %s18, 1
        %s367 = scalar_select %p366, %s18, 1
        %s368 = scalar_lea.vmem %s1, %s367
      $region64: #{_resblock_forward_impl.1} parent=55 // pred_fallthru
        _
    $region56: #{_resblock_forward_impl.1} parent=5 // pred_fallthru
      _
    %p369 = scmp.le.s32.totalorder 1, %s18
    %p370 = scmp.lt.s32.totalorder %s18, 3
    %p371 = pnand %p369, %p370
    %p372 = pneg %p371
    // Predicated region
    $region65: #{_resblock_forward_impl.1} parent=5 // pred_check
      _
    $region66: #{_resblock_forward_impl.1} parent=5 // pred_check_branch
      %374 = sbr.rel (%p371) target = $region68
    $region67: #{_resblock_forward_impl.1} parent=5 // pred_region
      %s375 = ssub.s32 %s18, 1
      %p376 = scmp.lt.s32.totalorder %s23, 1
      %s377 = scalar_select %p376, %s23, 1
      %s378 = smul.addr %s377, 4
      %s379 = smul.addr %s378, 8
      %s380 = scalar_lea.vmem %s0, %s379
      %p381 = pneg %p44
      %p382 = pneg %p41
      %p383 = scmp.lt.s32.totalorder %s23, 1
      %s384 = scalar_select %p383, %s23, 1
      %s385 = scalar_lea.vmem %s1, %s384
      %p386 = pneg %p70
      %p387 = pneg %p67
      %p388 = pneg %p91
      %p389 = pneg %p88
      %p390 = pneg %p112
      %p391 = pneg %p109
      %p392 = pneg %p133
      %p393 = pneg %p130
      %p394 = pneg %p154
      %p395 = pneg %p151
      %p396 = pneg %p175
      %p397 = pneg %p172
      %p398 = pneg %p196
      %p399 = pneg %p193
      %p400 = pneg %p217
      %p401 = pneg %p214
      %p402 = pneg %p238
      %p403 = pneg %p235
      %p404 = pneg %p259
      %p405 = pneg %p256
      %p406 = pneg %p280
      %p407 = pneg %p277
      %p408 = pneg %p306
      %p409 = pneg %p303
      %p410 = scmp.lt.s32.totalorder %s23, 1
      %s411 = scalar_select %p410, %s23, 1
      %s412 = smul.addr %s411, 4
      %s413 = smul.addr %s412, 8
      %s414 = scalar_lea.vmem %s12, %s413
      %p415 = scmp.lt.s32.totalorder %s23, 1
      %s416 = scalar_select %p415, %s23, 1
      %s417 = smul.addr %s416, 4
      %s418 = smul.addr %s417, 8
      %s419 = scalar_lea.vmem %s0, %s418
      %p420 = scmp.lt.s32.totalorder %s23, 1
      %s421 = scalar_select %p420, %s23, 1
      %s422 = scalar_lea.vmem %s1, %s421
      %p423 = scmp.lt.s32.totalorder %s23, 1
      %s424 = scalar_select %p423, %s23, 1
      %s425 = smul.addr %s424, 4
      %s426 = smul.addr %s425, 8
      %s427 = scalar_lea.vmem %s12, %s426
      %v428 = vld [vmem:[%s419] sm:$0xff]
      %v429 = vld [vmem:[%s419 + $0x8] sm:$0xff]
      %v430 = vld [vmem:[%s419 + $0x10] sm:$0xff]
      %v431 = vld [vmem:[%s419 + $0x18] sm:$0xff]
      %vm432 = vcmask 130048
      %433 = vst.msk [vmem:[#allocation2] sm:$0xff] %vm432, 0.0
      %434 = vst.msk [vmem:[#allocation2 + $0x8] sm:$0xff] %vm432, 0.0
      %435 = vst.msk [vmem:[#allocation2 + $0x10] sm:$0xff] %vm432, 0.0
      %436 = vst.msk [vmem:[#allocation2 + $0x18] sm:$0xff] %vm432, 0.0
      %vm437 = vcmask 786048
      %438 = vst.msk [vmem:[#allocation2] sm:$0xff] %vm437, 0.0
      %439 = vst.msk [vmem:[#allocation2 + $0x8] sm:$0xff] %vm437, 0.0
      %440 = vst.msk [vmem:[#allocation2 + $0x10] sm:$0xff] %vm437, 0.0
      %441 = vst.msk [vmem:[#allocation2 + $0x18] sm:$0xff] %vm437, 0.0
      %v442 = vlaneseq
      %v443 = vand.u32 %v442, 127
      %v444 = vand.u32 %v443, 7
      %vm445 = vcmp.gt.s32.totalorder %v444, 0
      %v446 = vsel %vm445, 1, 0
      %v447 = vcvt.s32.f32 %v446
      %vm448 = vcmp.lt.s32.totalorder %v444, 7
      %v449 = vsel %vm448, 1, 0
      %v450 = vcvt.s32.f32 %v449
      %vm451 = vcmask 523264
      %v452 = vsel %vm451, %v428, 0.0
      %453 = vadd.xlane.f32.xlu0 %v452
      %v454 = vpop.xlane.xlu0 %453
      %v455 = vsel %vm451, %v429, 0.0
      %456 = vadd.xlane.f32.xlu0 %v455
      %v457 = vpop.xlane.xlu0 %456
      %v458 = vsel %vm451, %v430, 0.0
      %459 = vadd.xlane.f32.xlu0 %v458
      %v460 = vpop.xlane.xlu0 %459
      %v461 = vsel %vm451, %v431, 0.0
      %462 = vadd.xlane.f32.xlu0 %v461
      %v463 = vpop.xlane.xlu0 %462
      %v464 = vrcp.pop 64.0
      %v465 = vmul.f32 %v454, %v464
      %v466 = vmul.f32 %v457, %v464
      %v467 = vmul.f32 %v460, %v464
      %v468 = vmul.f32 %v463, %v464
      %v469 = vsub.f32 %v428, %v465
      %v470 = vsub.f32 %v429, %v466
      %v471 = vsub.f32 %v430, %v467
      %v472 = vsub.f32 %v431, %v468
      %v473 = vmul.f32 %v469, %v469
      %v474 = vmul.f32 %v470, %v470
      %v475 = vmul.f32 %v471, %v471
      %v476 = vmul.f32 %v472, %v472
      %v477 = vsel %vm451, %v473, 0.0
      %478 = vadd.xlane.f32.xlu0 %v477
      %v479 = vpop.xlane.xlu0 %478
      %v480 = vsel %vm451, %v474, 0.0
      %481 = vadd.xlane.f32.xlu0 %v480
      %v482 = vpop.xlane.xlu0 %481
      %v483 = vsel %vm451, %v475, 0.0
      %484 = vadd.xlane.f32.xlu0 %v483
      %v485 = vpop.xlane.xlu0 %484
      %v486 = vsel %vm451, %v476, 0.0
      %487 = vadd.xlane.f32.xlu0 %v486
      %v488 = vpop.xlane.xlu0 %487
      %v489 = vmul.f32 %v479, %v464
      %v490 = vmul.f32 %v482, %v464
      %v491 = vmul.f32 %v485, %v464
      %v492 = vmul.f32 %v488, %v464
      %v493 = vadd.f32 %v489, 1e-05
      %v494 = vadd.f32 %v490, 1e-05
      %v495 = vadd.f32 %v491, 1e-05
      %v496 = vadd.f32 %v492, 1e-05
      %v497 = vrsqrt.pop %v493
      %v498 = vrsqrt.pop %v494
      %v499 = vrsqrt.pop %v495
      %v500 = vrsqrt.pop %v496
      %v501 = vmul.f32 %v469, %v497
      %v502 = vmul.f32 %v470, %v498
      %v503 = vmul.f32 %v471, %v499
      %v504 = vmul.f32 %v472, %v500
      %v505 = vld [vmem:[%s2] sm:$0xff]
      %v506 = vld [vmem:[%s2 + $0x8] sm:$0xff]
      %v507 = vld [vmem:[%s2 + $0x10] sm:$0xff]
      %v508 = vld [vmem:[%s2 + $0x18] sm:$0xff]
      %510 = vset.pattern.permute.xlu0 0
      %511 = vperm.xlu0 %510, %v505
      %v512 = vpop.permute.xlu0 %511
      %515 = vset.pattern.permute.xlu0 0
      %516 = vperm.xlu0 %515, %v506
      %v517 = vpop.permute.xlu0 %516
      %520 = vset.pattern.permute.xlu0 0
      %521 = vperm.xlu0 %520, %v507
      %v522 = vpop.permute.xlu0 %521
      %525 = vset.pattern.permute.xlu0 0
      %526 = vperm.xlu0 %525, %v508
      %v527 = vpop.permute.xlu0 %526
      %v529 = vmul.f32 %v501, %v512
      %v530 = vmul.f32 %v502, %v517
      %v531 = vmul.f32 %v503, %v522
      %v532 = vmul.f32 %v504, %v527
      %v533 = vld [vmem:[%s3] sm:$0xff]
      %v534 = vld [vmem:[%s3 + $0x8] sm:$0xff]
      %v535 = vld [vmem:[%s3 + $0x10] sm:$0xff]
      %v536 = vld [vmem:[%s3 + $0x18] sm:$0xff]
      %538 = vset.pattern.permute.xlu0 0
      %539 = vperm.xlu0 %538, %v533
      %v540 = vpop.permute.xlu0 %539
      %543 = vset.pattern.permute.xlu0 0
      %544 = vperm.xlu0 %543, %v534
      %v545 = vpop.permute.xlu0 %544
      %548 = vset.pattern.permute.xlu0 0
      %549 = vperm.xlu0 %548, %v535
      %v550 = vpop.permute.xlu0 %549
      %553 = vset.pattern.permute.xlu0 0
      %554 = vperm.xlu0 %553, %v536
      %v555 = vpop.permute.xlu0 %554
      %v557 = vadd.f32 %v529, %v540
      %v558 = vadd.f32 %v530, %v545
      %v559 = vadd.f32 %v531, %v550
      %v560 = vadd.f32 %v532, %v555
      %v561 = vxor.u32 %v557, 2147483648
      %v562 = vxor.u32 %v558, 2147483648
      %v563 = vxor.u32 %v559, 2147483648
      %v564 = vxor.u32 %v560, 2147483648
      %v565 = vmul.f32 %v561, 1.442695
      %v566 = vpow.pop %v565
      %v567 = vmul.f32 %v562, 1.442695
      %v568 = vpow.pop %v567
      %v569 = vmul.f32 %v563, 1.442695
      %v570 = vpow.pop %v569
      %v571 = vmul.f32 %v564, 1.442695
      %v572 = vpow.pop %v571
      %v573 = vadd.f32 %v566, 1.0
      %v574 = vadd.f32 %v568, 1.0
      %v575 = vadd.f32 %v570, 1.0
      %v576 = vadd.f32 %v572, 1.0
      %v577 = vrcp.pop %v573
      %v578 = vmul.f32 1.0, %v577
      %v579 = vrcp.pop %v574
      %v580 = vmul.f32 1.0, %v579
      %v581 = vrcp.pop %v575
      %v582 = vmul.f32 1.0, %v581
      %v583 = vrcp.pop %v576
      %v584 = vmul.f32 1.0, %v583
      %v585 = vmul.f32 %v557, %v578
      %v586 = vmul.f32 %v558, %v580
      %v587 = vmul.f32 %v559, %v582
      %v588 = vmul.f32 %v560, %v584
      %593 = vrot.lane.b32.xlu0 %v585, 16
      %v594 = vpop.permute.xlu0 %593
      %595 = vrot.lane.b32.xlu0 %v586, 16
      %v596 = vpop.permute.xlu0 %595
      %597 = vrot.lane.b32.xlu0 %v587, 16
      %v598 = vpop.permute.xlu0 %597
      %599 = vrot.lane.b32.xlu0 %v588, 16
      %v600 = vpop.permute.xlu0 %599
      %vm605 = vcmask 654464
      %606 = vst.msk [vmem:[#allocation2] sm:$0xff] %vm605, %v594
      %607 = vst.msk [vmem:[#allocation2 + $0x8] sm:$0xff] %vm605, %v596
      %608 = vst.msk [vmem:[#allocation2 + $0x10] sm:$0xff] %vm605, %v598
      %609 = vst.msk [vmem:[#allocation2 + $0x18] sm:$0xff] %vm605, %v600
      %v610 = vld [vmem:[#allocation2] sm:$0xff]
      %v611 = vld [vmem:[#allocation2 + $0x8] sm:$0xff]
      %v612 = vld [vmem:[#allocation2 + $0x10] sm:$0xff]
      %v613 = vld [vmem:[#allocation2 + $0x18] sm:$0xff]
      %615 = vrot.lane.b32.xlu0 %v447, 7
      %v616 = vpop.permute.xlu0 %615
      %v618 = vmul.f32 %v610, %v616
      %v619 = vmul.f32 %v611, %v616
      %v620 = vmul.f32 %v612, %v616
      %v621 = vmul.f32 %v613, %v616
      %623 = vrot.lane.b32.xlu0 %v450, 9
      %v624 = vpop.permute.xlu0 %623
      %v626 = vmul.f32 %v610, %v624
      %v627 = vmul.f32 %v611, %v624
      %v628 = vmul.f32 %v612, %v624
      %v629 = vmul.f32 %v613, %v624
      %630 = vrot.lane.b32.xlu0 %v447, 15
      %v631 = vpop.permute.xlu0 %630
      %v633 = vmul.f32 %v610, %v631
      %v634 = vmul.f32 %v611, %v631
      %v635 = vmul.f32 %v612, %v631
      %v636 = vmul.f32 %v613, %v631
      %637 = vrot.lane.b32.xlu0 %v450, 17
      %v638 = vpop.permute.xlu0 %637
      %v640 = vmul.f32 %v610, %v638
      %v641 = vmul.f32 %v611, %v638
      %v642 = vmul.f32 %v612, %v638
      %v643 = vmul.f32 %v613, %v638
      %644 = vrot.lane.b32.xlu0 %v447, 23
      %v645 = vpop.permute.xlu0 %644
      %v647 = vmul.f32 %v610, %v645
      %v648 = vmul.f32 %v611, %v645
      %v649 = vmul.f32 %v612, %v645
      %v650 = vmul.f32 %v613, %v645
      %651 = vrot.lane.b32.xlu0 %v450, 25
      %v652 = vpop.permute.xlu0 %651
      %v654 = vmul.f32 %v610, %v652
      %v655 = vmul.f32 %v611, %v652
      %v656 = vmul.f32 %v612, %v652
      %v657 = vmul.f32 %v613, %v652
      %662 = vrot.lane.b32.xlu0 %v610, 127
      %v663 = vpop.permute.xlu0 %662
      %664 = vrot.lane.b32.xlu0 %v611, 127
      %v665 = vpop.permute.xlu0 %664
      %666 = vrot.lane.b32.xlu0 %v612, 127
      %v667 = vpop.permute.xlu0 %666
      %668 = vrot.lane.b32.xlu0 %v613, 127
      %v669 = vpop.permute.xlu0 %668
      %674 = vrot.lane.b32.xlu0 %v626, 126
      %v675 = vpop.permute.xlu0 %674
      %676 = vrot.lane.b32.xlu0 %v627, 126
      %v677 = vpop.permute.xlu0 %676
      %678 = vrot.lane.b32.xlu0 %v628, 126
      %v679 = vpop.permute.xlu0 %678
      %680 = vrot.lane.b32.xlu0 %v629, 126
      %v681 = vpop.permute.xlu0 %680
      %686 = vrot.lane.b32.xlu0 %v633, 120
      %v687 = vpop.permute.xlu0 %686
      %688 = vrot.lane.b32.xlu0 %v634, 120
      %v689 = vpop.permute.xlu0 %688
      %690 = vrot.lane.b32.xlu0 %v635, 120
      %v691 = vpop.permute.xlu0 %690
      %692 = vrot.lane.b32.xlu0 %v636, 120
      %v693 = vpop.permute.xlu0 %692
      %694 = vrot.lane.b32.xlu0 %v585, 7
      %v695 = vpop.permute.xlu0 %694
      %696 = vrot.lane.b32.xlu0 %v586, 7
      %v697 = vpop.permute.xlu0 %696
      %698 = vrot.lane.b32.xlu0 %v587, 7
      %v699 = vpop.permute.xlu0 %698
      %700 = vrot.lane.b32.xlu0 %v588, 7
      %v701 = vpop.permute.xlu0 %700
      %706 = vrot.lane.b32.xlu0 %v640, 118
      %v707 = vpop.permute.xlu0 %706
      %708 = vrot.lane.b32.xlu0 %v641, 118
      %v709 = vpop.permute.xlu0 %708
      %710 = vrot.lane.b32.xlu0 %v642, 118
      %v711 = vpop.permute.xlu0 %710
      %712 = vrot.lane.b32.xlu0 %v643, 118
      %v713 = vpop.permute.xlu0 %712
      %718 = vrot.lane.b32.xlu0 %v647, 112
      %v719 = vpop.permute.xlu0 %718
      %720 = vrot.lane.b32.xlu0 %v648, 112
      %v721 = vpop.permute.xlu0 %720
      %722 = vrot.lane.b32.xlu0 %v649, 112
      %v723 = vpop.permute.xlu0 %722
      %724 = vrot.lane.b32.xlu0 %v650, 112
      %v725 = vpop.permute.xlu0 %724
      %726 = vrot.lane.b32.xlu0 %v610, 111
      %v727 = vpop.permute.xlu0 %726
      %728 = vrot.lane.b32.xlu0 %v611, 111
      %v729 = vpop.permute.xlu0 %728
      %730 = vrot.lane.b32.xlu0 %v612, 111
      %v731 = vpop.permute.xlu0 %730
      %732 = vrot.lane.b32.xlu0 %v613, 111
      %v733 = vpop.permute.xlu0 %732
      %738 = vrot.lane.b32.xlu0 %v654, 110
      %v739 = vpop.permute.xlu0 %738
      %740 = vrot.lane.b32.xlu0 %v655, 110
      %v741 = vpop.permute.xlu0 %740
      %742 = vrot.lane.b32.xlu0 %v656, 110
      %v743 = vpop.permute.xlu0 %742
      %744 = vrot.lane.b32.xlu0 %v657, 110
      %v745 = vpop.permute.xlu0 %744
      %v746 = vld [vmem:[%s4] sm:$0xff]
      %v747 = vld [vmem:[%s4 + $0x8] sm:$0xff]
      %v748 = vld [vmem:[%s4 + $0x10] sm:$0xff]
      %v749 = vld [vmem:[%s4 + $0x18] sm:$0xff]
      %v750 = vld [vmem:[%s4 + $0x20] sm:$0xff]
      %v751 = vld [vmem:[%s4 + $0x28] sm:$0xff]
      %v752 = vld [vmem:[%s4 + $0x30] sm:$0xff]
      %v753 = vld [vmem:[%s4 + $0x38] sm:$0xff]
      %v754 = vld [vmem:[%s4 + $0x40] sm:$0xff]
      %v755 = vld [vmem:[%s4 + $0x48] sm:$0xff]
      %v756 = vld [vmem:[%s4 + $0x50] sm:$0xff]
      %v757 = vld [vmem:[%s4 + $0x58] sm:$0xff]
      %v758 = vld [vmem:[%s5] sm:$0xff]
      %v759 = vld [vmem:[%s5 + $0x8] sm:$0xff]
      %v760 = vld [vmem:[%s5 + $0x10] sm:$0xff]
      %v761 = vld [vmem:[%s5 + $0x18] sm:$0xff]
      %763 = vset.pattern.permute.xlu0 0
      %764 = vperm.xlu0 %763, %v758
      %v765 = vpop.permute.xlu0 %764
      %768 = vset.pattern.permute.xlu0 0
      %769 = vperm.xlu0 %768, %v759
      %v770 = vpop.permute.xlu0 %769
      %773 = vset.pattern.permute.xlu0 0
      %774 = vperm.xlu0 %773, %v760
      %v775 = vpop.permute.xlu0 %774
      %778 = vset.pattern.permute.xlu0 0
      %779 = vperm.xlu0 %778, %v761
      %v780 = vpop.permute.xlu0 %779
      %786 = vrot.lane.b32.xlu0 %v618, 121
      %v787 = vpop.permute.xlu0 %786
      %788 = vrot.lane.b32.xlu0 %v619, 121
      %v789 = vpop.permute.xlu0 %788
      %790 = vrot.lane.b32.xlu0 %v620, 121
      %v791 = vpop.permute.xlu0 %790
      %792 = vrot.lane.b32.xlu0 %v621, 121
      %v793 = vpop.permute.xlu0 %792
      %794 = vrot.lane.b32.xlu0 %v663, 121
      %v795 = vpop.permute.xlu0 %794
      %796 = vrot.lane.b32.xlu0 %v665, 121
      %v797 = vpop.permute.xlu0 %796
      %798 = vrot.lane.b32.xlu0 %v667, 121
      %v799 = vpop.permute.xlu0 %798
      %800 = vrot.lane.b32.xlu0 %v669, 121
      %v801 = vpop.permute.xlu0 %800
      %802 = vrot.lane.b32.xlu0 %v675, 121
      %v803 = vpop.permute.xlu0 %802
      %804 = vrot.lane.b32.xlu0 %v677, 121
      %v805 = vpop.permute.xlu0 %804
      %806 = vrot.lane.b32.xlu0 %v679, 121
      %v807 = vpop.permute.xlu0 %806
      %808 = vrot.lane.b32.xlu0 %v681, 121
      %v809 = vpop.permute.xlu0 %808
      %810 = vrot.lane.b32.xlu0 %v687, 121
      %v811 = vpop.permute.xlu0 %810
      %812 = vrot.lane.b32.xlu0 %v689, 121
      %v813 = vpop.permute.xlu0 %812
      %814 = vrot.lane.b32.xlu0 %v691, 121
      %v815 = vpop.permute.xlu0 %814
      %816 = vrot.lane.b32.xlu0 %v693, 121
      %v817 = vpop.permute.xlu0 %816
      %818 = vrot.lane.b32.xlu0 %v695, 121
      %v819 = vpop.permute.xlu0 %818
      %820 = vrot.lane.b32.xlu0 %v697, 121
      %v821 = vpop.permute.xlu0 %820
      %822 = vrot.lane.b32.xlu0 %v699, 121
      %v823 = vpop.permute.xlu0 %822
      %824 = vrot.lane.b32.xlu0 %v701, 121
      %v825 = vpop.permute.xlu0 %824
      %826 = vrot.lane.b32.xlu0 %v707, 121
      %v827 = vpop.permute.xlu0 %826
      %828 = vrot.lane.b32.xlu0 %v709, 121
      %v829 = vpop.permute.xlu0 %828
      %830 = vrot.lane.b32.xlu0 %v711, 121
      %v831 = vpop.permute.xlu0 %830
      %832 = vrot.lane.b32.xlu0 %v713, 121
      %v833 = vpop.permute.xlu0 %832
      %834 = vrot.lane.b32.xlu0 %v719, 121
      %v835 = vpop.permute.xlu0 %834
      %836 = vrot.lane.b32.xlu0 %v721, 121
      %v837 = vpop.permute.xlu0 %836
      %838 = vrot.lane.b32.xlu0 %v723, 121
      %v839 = vpop.permute.xlu0 %838
      %840 = vrot.lane.b32.xlu0 %v725, 121
      %v841 = vpop.permute.xlu0 %840
      %842 = vrot.lane.b32.xlu0 %v727, 121
      %v843 = vpop.permute.xlu0 %842
      %844 = vrot.lane.b32.xlu0 %v729, 121
      %v845 = vpop.permute.xlu0 %844
      %846 = vrot.lane.b32.xlu0 %v731, 121
      %v847 = vpop.permute.xlu0 %846
      %848 = vrot.lane.b32.xlu0 %v733, 121
      %v849 = vpop.permute.xlu0 %848
      %850 = vrot.lane.b32.xlu0 %v739, 121
      %v851 = vpop.permute.xlu0 %850
      %852 = vrot.lane.b32.xlu0 %v741, 121
      %v853 = vpop.permute.xlu0 %852
      %854 = vrot.lane.b32.xlu0 %v743, 121
      %v855 = vpop.permute.xlu0 %854
      %856 = vrot.lane.b32.xlu0 %v745, 121
      %v857 = vpop.permute.xlu0 %856
      %vm894 = vcmask 261120
      %v896 = vsel %vm894, %v748, 0
      %v899 = vsel %vm894, %v751, 0
      %v902 = vsel %vm894, %v754, 0
      %v905 = vsel %vm894, %v757, 0
      %907 = vmatprep.subr.mxu0 0.0
      %908 = vmatpush1.msra.mxu0 %v817
      %909 = vmatprep.subr.mxu0 0.0
      %910 = vmatpush1.msra.mxu0 %v815
      %911 = vmatprep.subr.mxu0 0.0
      %912 = vmatpush1.msra.mxu0 %v813
      %913 = vmatprep.subr.mxu0 0.0
      %914 = vmatpush1.msra.mxu0 %v811
      %915 = vmatprep.subr.mxu0 0.0
      %916 = vmatpush1.msra.mxu0 %v809
      %917 = vmatprep.subr.mxu0 0.0
      %918 = vmatpush1.msra.mxu0 %v807
      %919 = vmatprep.subr.mxu0 0.0
      %920 = vmatpush1.msra.mxu0 %v805
      %921 = vmatprep.subr.mxu0 0.0
      %922 = vmatpush1.msra.mxu0 %v803
      %923 = vmatprep.subr.mxu0 0.0
      %924 = vmatpush1.msra.mxu0 %v801
      %925 = vmatprep.subr.mxu0 0.0
      %926 = vmatpush1.msra.mxu0 %v799
      %927 = vmatprep.subr.mxu0 0.0
      %928 = vmatpush1.msra.mxu0 %v797
      %929 = vmatprep.subr.mxu0 0.0
      %930 = vmatpush1.msra.mxu0 %v795
      %931 = vmatprep.subr.mxu0 0.0
      %932 = vmatpush1.msra.mxu0 %v793
      %933 = vmatprep.subr.mxu0 0.0
      %934 = vmatpush1.msra.mxu0 %v791
      %935 = vmatprep.subr.mxu0 0.0
      %936 = vmatpush1.msra.mxu0 %v789
      %937 = vmatprep.subr.mxu0 0.0
      %938 = vmatpush1.msra.mxu0 %v787
      %939 = vmatprep.subr.mxu0 0.0
      %940 = vmatpush2.msra.mxu0 %v849
      %941 = vmatprep.subr.mxu0 0.0
      %942 = vmatpush2.msra.mxu0 %v847
      %943 = vmatprep.subr.mxu0 0.0
      %944 = vmatpush2.msra.mxu0 %v845
      %945 = vmatprep.subr.mxu0 0.0
      %946 = vmatpush2.msra.mxu0 %v843
      %947 = vmatprep.subr.mxu0 0.0
      %948 = vmatpush2.msra.mxu0 %v841
      %949 = vmatprep.subr.mxu0 0.0
      %950 = vmatpush2.msra.mxu0 %v839
      %951 = vmatprep.subr.mxu0 0.0
      %952 = vmatpush2.msra.mxu0 %v837
      %953 = vmatprep.subr.mxu0 0.0
      %954 = vmatpush2.msra.mxu0 %v835
      %955 = vmatprep.subr.mxu0 0.0
      %956 = vmatpush2.msra.mxu0 %v833
      %957 = vmatprep.subr.mxu0 0.0
      %958 = vmatpush2.msra.mxu0 %v831
      %959 = vmatprep.subr.mxu0 0.0
      %960 = vmatpush2.msra.mxu0 %v829
      %961 = vmatprep.subr.mxu0 0.0
      %962 = vmatpush2.msra.mxu0 %v827
      %963 = vmatprep.subr.mxu0 0.0
      %964 = vmatpush2.msra.mxu0 %v825
      %965 = vmatprep.subr.mxu0 0.0
      %966 = vmatpush2.msra.mxu0 %v823
      %967 = vmatprep.subr.mxu0 0.0
      %968 = vmatpush2.msra.mxu0 %v821
      %969 = vmatprep.subr.mxu0 0.0
      %970 = vmatpush2.msra.mxu0 %v819
      %971 = vmatprep.mubr.f32.mxu0 %v747
      %972 = vmatmul.mubr.f32.gmra.mxu0 %v746
      %v973 = vpop.f32.mrf.mxu0
      %v974 = vadd.f32 %v765, %v973
      %v975 = vpop.f32.mrf.mxu0
      %976 = vmatprep.mubr.f32.mxu0 %v750
      %977 = vmatmul.mubr.f32.gmra.mxu0 %v749
      %v978 = vpop.f32.mrf.mxu0
      %v979 = vadd.f32 %v770, %v978
      %v980 = vpop.f32.mrf.mxu0
      %981 = vmatprep.mubr.f32.mxu0 %v753
      %982 = vmatmul.mubr.f32.gmra.mxu0 %v752
      %v983 = vpop.f32.mrf.mxu0
      %v984 = vadd.f32 %v775, %v983
      %v985 = vpop.f32.mrf.mxu0
      %986 = vmatprep.mubr.f32.mxu0 %v756
      %987 = vmatmul.mubr.f32.gmra.mxu0 %v755
      %v988 = vpop.f32.mrf.mxu0
      %v989 = vadd.f32 %v780, %v988
      %v990 = vpop.f32.mrf.mxu0
      %991 = vdwg.mxu0
      %992 = vmatprep.subr.mxu0 0.0
      %993 = vmatpush1.msra.mxu0 0.0
      %994 = vmatprep.subr.mxu0 0.0
      %995 = vmatpush1.msra.mxu0 0.0
      %996 = vmatprep.subr.mxu0 0.0
      %997 = vmatpush1.msra.mxu0 0.0
      %998 = vmatprep.subr.mxu0 0.0
      %999 = vmatpush1.msra.mxu0 0.0
      %1000 = vmatprep.subr.mxu0 0.0
      %1001 = vmatpush1.msra.mxu0 0.0
      %1002 = vmatprep.subr.mxu0 0.0
      %1003 = vmatpush1.msra.mxu0 0.0
      %1004 = vmatprep.subr.mxu0 0.0
      %1005 = vmatpush1.msra.mxu0 0.0
      %1006 = vmatprep.subr.mxu0 0.0
      %1007 = vmatpush1.msra.mxu0 0.0
      %1008 = vmatprep.subr.mxu0 0.0
      %1009 = vmatpush1.msra.mxu0 0.0
      %1010 = vmatprep.subr.mxu0 0.0
      %1011 = vmatpush1.msra.mxu0 0.0
      %1012 = vmatprep.subr.mxu0 0.0
      %1013 = vmatpush1.msra.mxu0 0.0
      %1014 = vmatprep.subr.mxu0 0.0
      %1015 = vmatpush1.msra.mxu0 0.0
      %1016 = vmatprep.subr.mxu0 0.0
      %1017 = vmatpush1.msra.mxu0 %v857
      %1018 = vmatprep.subr.mxu0 0.0
      %1019 = vmatpush1.msra.mxu0 %v855
      %1020 = vmatprep.subr.mxu0 0.0
      %1021 = vmatpush1.msra.mxu0 %v853
      %1022 = vmatprep.subr.mxu0 0.0
      %1023 = vmatpush1.msra.mxu0 %v851
      %1024 = vmatprep.subr.mxu0 0.0
      %1025 = vmatpush2.msra.mxu0 0.0
      %1026 = vmatprep.subr.mxu0 0.0
      %1027 = vmatpush2.msra.mxu0 0.0
      %1028 = vmatprep.subr.mxu0 0.0
      %1029 = vmatpush2.msra.mxu0 0.0
      %1030 = vmatprep.subr.mxu0 0.0
      %1031 = vmatpush2.msra.mxu0 0.0
      %1032 = vmatprep.subr.mxu0 0.0
      %1033 = vmatpush2.msra.mxu0 0.0
      %1034 = vmatprep.subr.mxu0 0.0
      %1035 = vmatpush2.msra.mxu0 0.0
      %1036 = vmatprep.subr.mxu0 0.0
      %1037 = vmatpush2.msra.mxu0 0.0
      %1038 = vmatprep.subr.mxu0 0.0
      %1039 = vmatpush2.msra.mxu0 0.0
      %1040 = vmatprep.subr.mxu0 0.0
      %1041 = vmatpush2.msra.mxu0 0.0
      %1042 = vmatprep.subr.mxu0 0.0
      %1043 = vmatpush2.msra.mxu0 0.0
      %1044 = vmatprep.subr.mxu0 0.0
      %1045 = vmatpush2.msra.mxu0 0.0
      %1046 = vmatprep.subr.mxu0 0.0
      %1047 = vmatpush2.msra.mxu0 0.0
      %1048 = vmatprep.subr.mxu0 0.0
      %1049 = vmatpush2.msra.mxu0 0.0
      %1050 = vmatprep.subr.mxu0 0.0
      %1051 = vmatpush2.msra.mxu0 0.0
      %1052 = vmatprep.subr.mxu0 0.0
      %1053 = vmatpush2.msra.mxu0 0.0
      %1054 = vmatprep.subr.mxu0 0.0
      %1055 = vmatpush2.msra.mxu0 0.0
      %1056 = vmatprep.mubr.f32.mxu0 0.0
      %1057 = vmatmul.mubr.f32.gmra.mxu0 %v896
      %v1058 = vpop.f32.mrf.mxu0
      %v1059 = vadd.f32 %v974, %v1058
      %v1060 = vpop.f32.mrf.mxu0
      %1061 = vmatprep.mubr.f32.mxu0 0.0
      %1062 = vmatmul.mubr.f32.gmra.mxu0 %v899
      %v1063 = vpop.f32.mrf.mxu0
      %v1064 = vadd.f32 %v979, %v1063
      %v1065 = vpop.f32.mrf.mxu0
      %1066 = vmatprep.mubr.f32.mxu0 0.0
      %1067 = vmatmul.mubr.f32.gmra.mxu0 %v902
      %v1068 = vpop.f32.mrf.mxu0
      %v1069 = vadd.f32 %v984, %v1068
      %v1070 = vpop.f32.mrf.mxu0
      %1071 = vmatprep.mubr.f32.mxu0 0.0
      %1072 = vmatmul.mubr.f32.gmra.mxu0 %v905
      %v1073 = vpop.f32.mrf.mxu0
      %v1074 = vadd.f32 %v989, %v1073
      %v1075 = vpop.f32.mrf.mxu0
      %1076 = vdwg.mxu0
      %v1077 = vld [vmem:[%s422] sm:$0x1]
      %v1078 = vxor.u32 %v1077, 2147483648
      %v1079 = vmul.f32 %v1078, 1.442695
      %v1080 = vpow.pop %v1079
      %v1081 = vadd.f32 %v1080, 1.0
      %v1082 = vrcp.pop %v1081
      %v1083 = vmul.f32 1.0, %v1082
      %v1084 = vmul.f32 %v1077, %v1083
      %v1085 = vld [vmem:[%s6] sm:$0xff]
      %v1086 = vld [vmem:[%s6 + $0x8] sm:$0xff]
      %v1087 = vld [vmem:[%s6 + $0x10] sm:$0xff]
      %v1088 = vld [vmem:[%s6 + $0x18] sm:$0xff]
      %v1090 = vlaneseq
      %v1091 = vshrl.u32 %v1090, 7
      %v1092 = vsub.s32 0, %v1091
      %v1093 = vrot.slane %v1084, %v1092
      %v1095 = vmul.f32 %v1085, %v1093
      %v1096 = vmul.f32 %v1086, %v1093
      %v1097 = vmul.f32 %v1087, %v1093
      %v1098 = vmul.f32 %v1088, %v1093
      %v1099 = vsel %vm432, %v1095, 0.0
      %1100 = vadd.xlane.f32.xlu0 %v1099
      %v1101 = vpop.xlane.xlu0 %1100
      %v1102 = vsel %vm432, %v1096, 0.0
      %1103 = vadd.xlane.f32.xlu0 %v1102
      %v1104 = vpop.xlane.xlu0 %1103
      %v1105 = vsel %vm432, %v1097, 0.0
      %1106 = vadd.xlane.f32.xlu0 %v1105
      %v1107 = vpop.xlane.xlu0 %1106
      %v1108 = vsel %vm432, %v1098, 0.0
      %1109 = vadd.xlane.f32.xlu0 %v1108
      %v1110 = vpop.xlane.xlu0 %1109
      %v1111 = vld [vmem:[%s7] sm:$0xff]
      %v1112 = vld [vmem:[%s7 + $0x8] sm:$0xff]
      %v1113 = vld [vmem:[%s7 + $0x10] sm:$0xff]
      %v1114 = vld [vmem:[%s7 + $0x18] sm:$0xff]
      %v1115 = vadd.f32 %v1101, %v1111
      %v1116 = vadd.f32 %v1104, %v1112
      %v1117 = vadd.f32 %v1107, %v1113
      %v1118 = vadd.f32 %v1110, %v1114
      %1120 = vset.pattern.permute.xlu0 0
      %1121 = vperm.xlu0 %1120, %v1115
      %v1122 = vpop.permute.xlu0 %1121
      %1125 = vset.pattern.permute.xlu0 0
      %1126 = vperm.xlu0 %1125, %v1116
      %v1127 = vpop.permute.xlu0 %1126
      %1130 = vset.pattern.permute.xlu0 0
      %1131 = vperm.xlu0 %1130, %v1117
      %v1132 = vpop.permute.xlu0 %1131
      %1135 = vset.pattern.permute.xlu0 0
      %1136 = vperm.xlu0 %1135, %v1118
      %v1137 = vpop.permute.xlu0 %1136
      %v1139 = vadd.f32 %v1059, %v1122
      %v1140 = vadd.f32 %v1064, %v1127
      %v1141 = vadd.f32 %v1069, %v1132
      %v1142 = vadd.f32 %v1074, %v1137
      %v1143 = vsel %vm451, %v1139, 0.0
      %1144 = vadd.xlane.f32.xlu0 %v1143
      %v1145 = vpop.xlane.xlu0 %1144
      %v1146 = vsel %vm451, %v1140, 0.0
      %1147 = vadd.xlane.f32.xlu0 %v1146
      %v1148 = vpop.xlane.xlu0 %1147
      %v1149 = vsel %vm451, %v1141, 0.0
      %1150 = vadd.xlane.f32.xlu0 %v1149
      %v1151 = vpop.xlane.xlu0 %1150
      %v1152 = vsel %vm451, %v1142, 0.0
      %1153 = vadd.xlane.f32.xlu0 %v1152
      %v1154 = vpop.xlane.xlu0 %1153
      %v1155 = vmul.f32 %v1145, %v464
      %v1156 = vmul.f32 %v1148, %v464
      %v1157 = vmul.f32 %v1151, %v464
      %v1158 = vmul.f32 %v1154, %v464
      %v1159 = vsub.f32 %v1139, %v1155
      %v1160 = vsub.f32 %v1140, %v1156
      %v1161 = vsub.f32 %v1141, %v1157
      %v1162 = vsub.f32 %v1142, %v1158
      %v1163 = vmul.f32 %v1159, %v1159
      %v1164 = vmul.f32 %v1160, %v1160
      %v1165 = vmul.f32 %v1161, %v1161
      %v1166 = vmul.f32 %v1162, %v1162
      %v1167 = vsel %vm451, %v1163, 0.0
      %1168 = vadd.xlane.f32.xlu0 %v1167
      %v1169 = vpop.xlane.xlu0 %1168
      %v1170 = vsel %vm451, %v1164, 0.0
      %1171 = vadd.xlane.f32.xlu0 %v1170
      %v1172 = vpop.xlane.xlu0 %1171
      %v1173 = vsel %vm451, %v1165, 0.0
      %1174 = vadd.xlane.f32.xlu0 %v1173
      %v1175 = vpop.xlane.xlu0 %1174
      %v1176 = vsel %vm451, %v1166, 0.0
      %1177 = vadd.xlane.f32.xlu0 %v1176
      %v1178 = vpop.xlane.xlu0 %1177
      %v1179 = vmul.f32 %v1169, %v464
      %v1180 = vmul.f32 %v1172, %v464
      %v1181 = vmul.f32 %v1175, %v464
      %v1182 = vmul.f32 %v1178, %v464
      %v1183 = vadd.f32 %v1179, 1e-05
      %v1184 = vadd.f32 %v1180, 1e-05
      %v1185 = vadd.f32 %v1181, 1e-05
      %v1186 = vadd.f32 %v1182, 1e-05
      %v1187 = vrsqrt.pop %v1183
      %v1188 = vrsqrt.pop %v1184
      %v1189 = vrsqrt.pop %v1185
      %v1190 = vrsqrt.pop %v1186
      %v1191 = vmul.f32 %v1159, %v1187
      %v1192 = vmul.f32 %v1160, %v1188
      %v1193 = vmul.f32 %v1161, %v1189
      %v1194 = vmul.f32 %v1162, %v1190
      %v1195 = vld [vmem:[%s8] sm:$0xff]
      %v1196 = vld [vmem:[%s8 + $0x8] sm:$0xff]
      %v1197 = vld [vmem:[%s8 + $0x10] sm:$0xff]
      %v1198 = vld [vmem:[%s8 + $0x18] sm:$0xff]
      %1200 = vset.pattern.permute.xlu0 0
      %1201 = vperm.xlu0 %1200, %v1195
      %v1202 = vpop.permute.xlu0 %1201
      %1205 = vset.pattern.permute.xlu0 0
      %1206 = vperm.xlu0 %1205, %v1196
      %v1207 = vpop.permute.xlu0 %1206
      %1210 = vset.pattern.permute.xlu0 0
      %1211 = vperm.xlu0 %1210, %v1197
      %v1212 = vpop.permute.xlu0 %1211
      %1215 = vset.pattern.permute.xlu0 0
      %1216 = vperm.xlu0 %1215, %v1198
      %v1217 = vpop.permute.xlu0 %1216
      %v1219 = vmul.f32 %v1191, %v1202
      %v1220 = vmul.f32 %v1192, %v1207
      %v1221 = vmul.f32 %v1193, %v1212
      %v1222 = vmul.f32 %v1194, %v1217
      %v1223 = vld [vmem:[%s9] sm:$0xff]
      %v1224 = vld [vmem:[%s9 + $0x8] sm:$0xff]
      %v1225 = vld [vmem:[%s9 + $0x10] sm:$0xff]
      %v1226 = vld [vmem:[%s9 + $0x18] sm:$0xff]
      %1228 = vset.pattern.permute.xlu0 0
      %1229 = vperm.xlu0 %1228, %v1223
      %v1230 = vpop.permute.xlu0 %1229
      %1233 = vset.pattern.permute.xlu0 0
      %1234 = vperm.xlu0 %1233, %v1224
      %v1235 = vpop.permute.xlu0 %1234
      %1238 = vset.pattern.permute.xlu0 0
      %1239 = vperm.xlu0 %1238, %v1225
      %v1240 = vpop.permute.xlu0 %1239
      %1243 = vset.pattern.permute.xlu0 0
      %1244 = vperm.xlu0 %1243, %v1226
      %v1245 = vpop.permute.xlu0 %1244
      %v1247 = vadd.f32 %v1219, %v1230
      %v1248 = vadd.f32 %v1220, %v1235
      %v1249 = vadd.f32 %v1221, %v1240
      %v1250 = vadd.f32 %v1222, %v1245
      %v1251 = vxor.u32 %v1247, 2147483648
      %v1252 = vxor.u32 %v1248, 2147483648
      %v1253 = vxor.u32 %v1249, 2147483648
      %v1254 = vxor.u32 %v1250, 2147483648
      %v1255 = vmul.f32 %v1251, 1.442695
      %v1256 = vpow.pop %v1255
      %v1257 = vmul.f32 %v1252, 1.442695
      %v1258 = vpow.pop %v1257
      %v1259 = vmul.f32 %v1253, 1.442695
      %v1260 = vpow.pop %v1259
      %v1261 = vmul.f32 %v1254, 1.442695
      %v1262 = vpow.pop %v1261
      %v1263 = vadd.f32 %v1256, 1.0
      %v1264 = vadd.f32 %v1258, 1.0
      %v1265 = vadd.f32 %v1260, 1.0
      %v1266 = vadd.f32 %v1262, 1.0
      %v1267 = vrcp.pop %v1263
      %v1268 = vmul.f32 1.0, %v1267
      %v1269 = vrcp.pop %v1264
      %v1270 = vmul.f32 1.0, %v1269
      %v1271 = vrcp.pop %v1265
      %v1272 = vmul.f32 1.0, %v1271
      %v1273 = vrcp.pop %v1266
      %v1274 = vmul.f32 1.0, %v1273
      %v1275 = vmul.f32 %v1247, %v1268
      %v1276 = vmul.f32 %v1248, %v1270
      %v1277 = vmul.f32 %v1249, %v1272
      %v1278 = vmul.f32 %v1250, %v1274
      %1283 = vrot.lane.b32.xlu0 %v1275, 16
      %v1284 = vpop.permute.xlu0 %1283
      %1285 = vrot.lane.b32.xlu0 %v1276, 16
      %v1286 = vpop.permute.xlu0 %1285
      %1287 = vrot.lane.b32.xlu0 %v1277, 16
      %v1288 = vpop.permute.xlu0 %1287
      %1289 = vrot.lane.b32.xlu0 %v1278, 16
      %v1290 = vpop.permute.xlu0 %1289
      %1295 = vst.msk [vmem:[#allocation2] sm:$0xff] %vm605, %v1284
      %1296 = vst.msk [vmem:[#allocation2 + $0x8] sm:$0xff] %vm605, %v1286
      %1297 = vst.msk [vmem:[#allocation2 + $0x10] sm:$0xff] %vm605, %v1288
      %1298 = vst.msk [vmem:[#allocation2 + $0x18] sm:$0xff] %vm605, %v1290
      %v1299 = vld [vmem:[#allocation2] sm:$0xff]
      %v1300 = vld [vmem:[#allocation2 + $0x8] sm:$0xff]
      %v1301 = vld [vmem:[#allocation2 + $0x10] sm:$0xff]
      %v1302 = vld [vmem:[#allocation2 + $0x18] sm:$0xff]
      %v1303 = vmul.f32 %v1299, %v616
      %v1304 = vmul.f32 %v1300, %v616
      %v1305 = vmul.f32 %v1301, %v616
      %v1306 = vmul.f32 %v1302, %v616
      %v1307 = vmul.f32 %v1299, %v624
      %v1308 = vmul.f32 %v1300, %v624
      %v1309 = vmul.f32 %v1301, %v624
      %v1310 = vmul.f32 %v1302, %v624
      %v1311 = vmul.f32 %v1299, %v631
      %v1312 = vmul.f32 %v1300, %v631
      %v1313 = vmul.f32 %v1301, %v631
      %v1314 = vmul.f32 %v1302, %v631
      %v1315 = vmul.f32 %v1299, %v638
      %v1316 = vmul.f32 %v1300, %v638
      %v1317 = vmul.f32 %v1301, %v638
      %v1318 = vmul.f32 %v1302, %v638
      %v1319 = vmul.f32 %v1299, %v645
      %v1320 = vmul.f32 %v1300, %v645
      %v1321 = vmul.f32 %v1301, %v645
      %v1322 = vmul.f32 %v1302, %v645
      %v1323 = vmul.f32 %v1299, %v652
      %v1324 = vmul.f32 %v1300, %v652
      %v1325 = vmul.f32 %v1301, %v652
      %v1326 = vmul.f32 %v1302, %v652
      %1331 = vrot.lane.b32.xlu0 %v1299, 127
      %v1332 = vpop.permute.xlu0 %1331
      %1333 = vrot.lane.b32.xlu0 %v1300, 127
      %v1334 = vpop.permute.xlu0 %1333
      %1335 = vrot.lane.b32.xlu0 %v1301, 127
      %v1336 = vpop.permute.xlu0 %1335
      %1337 = vrot.lane.b32.xlu0 %v1302, 127
      %v1338 = vpop.permute.xlu0 %1337
      %1343 = vrot.lane.b32.xlu0 %v1307, 126
      %v1344 = vpop.permute.xlu0 %1343
      %1345 = vrot.lane.b32.xlu0 %v1308, 126
      %v1346 = vpop.permute.xlu0 %1345
      %1347 = vrot.lane.b32.xlu0 %v1309, 126
      %v1348 = vpop.permute.xlu0 %1347
      %1349 = vrot.lane.b32.xlu0 %v1310, 126
      %v1350 = vpop.permute.xlu0 %1349
      %1355 = vrot.lane.b32.xlu0 %v1311, 120
      %v1356 = vpop.permute.xlu0 %1355
      %1357 = vrot.lane.b32.xlu0 %v1312, 120
      %v1358 = vpop.permute.xlu0 %1357
      %1359 = vrot.lane.b32.xlu0 %v1313, 120
      %v1360 = vpop.permute.xlu0 %1359
      %1361 = vrot.lane.b32.xlu0 %v1314, 120
      %v1362 = vpop.permute.xlu0 %1361
      %1363 = vrot.lane.b32.xlu0 %v1275, 7
      %v1364 = vpop.permute.xlu0 %1363
      %1365 = vrot.lane.b32.xlu0 %v1276, 7
      %v1366 = vpop.permute.xlu0 %1365
      %1367 = vrot.lane.b32.xlu0 %v1277, 7
      %v1368 = vpop.permute.xlu0 %1367
      %1369 = vrot.lane.b32.xlu0 %v1278, 7
      %v1370 = vpop.permute.xlu0 %1369
      %1375 = vrot.lane.b32.xlu0 %v1315, 118
      %v1376 = vpop.permute.xlu0 %1375
      %1377 = vrot.lane.b32.xlu0 %v1316, 118
      %v1378 = vpop.permute.xlu0 %1377
      %1379 = vrot.lane.b32.xlu0 %v1317, 118
      %v1380 = vpop.permute.xlu0 %1379
      %1381 = vrot.lane.b32.xlu0 %v1318, 118
      %v1382 = vpop.permute.xlu0 %1381
      %1387 = vrot.lane.b32.xlu0 %v1319, 112
      %v1388 = vpop.permute.xlu0 %1387
      %1389 = vrot.lane.b32.xlu0 %v1320, 112
      %v1390 = vpop.permute.xlu0 %1389
      %1391 = vrot.lane.b32.xlu0 %v1321, 112
      %v1392 = vpop.permute.xlu0 %1391
      %1393 = vrot.lane.b32.xlu0 %v1322, 112
      %v1394 = vpop.permute.xlu0 %1393
      %1395 = vrot.lane.b32.xlu0 %v1299, 111
      %v1396 = vpop.permute.xlu0 %1395
      %1397 = vrot.lane.b32.xlu0 %v1300, 111
      %v1398 = vpop.permute.xlu0 %1397
      %1399 = vrot.lane.b32.xlu0 %v1301, 111
      %v1400 = vpop.permute.xlu0 %1399
      %1401 = vrot.lane.b32.xlu0 %v1302, 111
      %v1402 = vpop.permute.xlu0 %1401
      %1407 = vrot.lane.b32.xlu0 %v1323, 110
      %v1408 = vpop.permute.xlu0 %1407
      %1409 = vrot.lane.b32.xlu0 %v1324, 110
      %v1410 = vpop.permute.xlu0 %1409
      %1411 = vrot.lane.b32.xlu0 %v1325, 110
      %v1412 = vpop.permute.xlu0 %1411
      %1413 = vrot.lane.b32.xlu0 %v1326, 110
      %v1414 = vpop.permute.xlu0 %1413
      %v1415 = vld [vmem:[%s10] sm:$0xff]
      %v1416 = vld [vmem:[%s10 + $0x8] sm:$0xff]
      %v1417 = vld [vmem:[%s10 + $0x10] sm:$0xff]
      %v1418 = vld [vmem:[%s10 + $0x18] sm:$0xff]
      %v1419 = vld [vmem:[%s10 + $0x20] sm:$0xff]
      %v1420 = vld [vmem:[%s10 + $0x28] sm:$0xff]
      %v1421 = vld [vmem:[%s10 + $0x30] sm:$0xff]
      %v1422 = vld [vmem:[%s10 + $0x38] sm:$0xff]
      %v1423 = vld [vmem:[%s10 + $0x40] sm:$0xff]
      %v1424 = vld [vmem:[%s10 + $0x48] sm:$0xff]
      %v1425 = vld [vmem:[%s10 + $0x50] sm:$0xff]
      %v1426 = vld [vmem:[%s10 + $0x58] sm:$0xff]
      %v1427 = vld [vmem:[%s11] sm:$0xff]
      %v1428 = vld [vmem:[%s11 + $0x8] sm:$0xff]
      %v1429 = vld [vmem:[%s11 + $0x10] sm:$0xff]
      %v1430 = vld [vmem:[%s11 + $0x18] sm:$0xff]
      %1432 = vset.pattern.permute.xlu0 0
      %1433 = vperm.xlu0 %1432, %v1427
      %v1434 = vpop.permute.xlu0 %1433
      %1437 = vset.pattern.permute.xlu0 0
      %1438 = vperm.xlu0 %1437, %v1428
      %v1439 = vpop.permute.xlu0 %1438
      %1442 = vset.pattern.permute.xlu0 0
      %1443 = vperm.xlu0 %1442, %v1429
      %v1444 = vpop.permute.xlu0 %1443
      %1447 = vset.pattern.permute.xlu0 0
      %1448 = vperm.xlu0 %1447, %v1430
      %v1449 = vpop.permute.xlu0 %1448
      %1455 = vrot.lane.b32.xlu0 %v1303, 121
      %v1456 = vpop.permute.xlu0 %1455
      %1457 = vrot.lane.b32.xlu0 %v1304, 121
      %v1458 = vpop.permute.xlu0 %1457
      %1459 = vrot.lane.b32.xlu0 %v1305, 121
      %v1460 = vpop.permute.xlu0 %1459
      %1461 = vrot.lane.b32.xlu0 %v1306, 121
      %v1462 = vpop.permute.xlu0 %1461
      %1463 = vrot.lane.b32.xlu0 %v1332, 121
      %v1464 = vpop.permute.xlu0 %1463
      %1465 = vrot.lane.b32.xlu0 %v1334, 121
      %v1466 = vpop.permute.xlu0 %1465
      %1467 = vrot.lane.b32.xlu0 %v1336, 121
      %v1468 = vpop.permute.xlu0 %1467
      %1469 = vrot.lane.b32.xlu0 %v1338, 121
      %v1470 = vpop.permute.xlu0 %1469
      %1471 = vrot.lane.b32.xlu0 %v1344, 121
      %v1472 = vpop.permute.xlu0 %1471
      %1473 = vrot.lane.b32.xlu0 %v1346, 121
      %v1474 = vpop.permute.xlu0 %1473
      %1475 = vrot.lane.b32.xlu0 %v1348, 121
      %v1476 = vpop.permute.xlu0 %1475
      %1477 = vrot.lane.b32.xlu0 %v1350, 121
      %v1478 = vpop.permute.xlu0 %1477
      %1479 = vrot.lane.b32.xlu0 %v1356, 121
      %v1480 = vpop.permute.xlu0 %1479
      %1481 = vrot.lane.b32.xlu0 %v1358, 121
      %v1482 = vpop.permute.xlu0 %1481
      %1483 = vrot.lane.b32.xlu0 %v1360, 121
      %v1484 = vpop.permute.xlu0 %1483
      %1485 = vrot.lane.b32.xlu0 %v1362, 121
      %v1486 = vpop.permute.xlu0 %1485
      %1487 = vrot.lane.b32.xlu0 %v1364, 121
      %v1488 = vpop.permute.xlu0 %1487
      %1489 = vrot.lane.b32.xlu0 %v1366, 121
      %v1490 = vpop.permute.xlu0 %1489
      %1491 = vrot.lane.b32.xlu0 %v1368, 121
      %v1492 = vpop.permute.xlu0 %1491
      %1493 = vrot.lane.b32.xlu0 %v1370, 121
      %v1494 = vpop.permute.xlu0 %1493
      %1495 = vrot.lane.b32.xlu0 %v1376, 121
      %v1496 = vpop.permute.xlu0 %1495
      %1497 = vrot.lane.b32.xlu0 %v1378, 121
      %v1498 = vpop.permute.xlu0 %1497
      %1499 = vrot.lane.b32.xlu0 %v1380, 121
      %v1500 = vpop.permute.xlu0 %1499
      %1501 = vrot.lane.b32.xlu0 %v1382, 121
      %v1502 = vpop.permute.xlu0 %1501
      %1503 = vrot.lane.b32.xlu0 %v1388, 121
      %v1504 = vpop.permute.xlu0 %1503
      %1505 = vrot.lane.b32.xlu0 %v1390, 121
      %v1506 = vpop.permute.xlu0 %1505
      %1507 = vrot.lane.b32.xlu0 %v1392, 121
      %v1508 = vpop.permute.xlu0 %1507
      %1509 = vrot.lane.b32.xlu0 %v1394, 121
      %v1510 = vpop.permute.xlu0 %1509
      %1511 = vrot.lane.b32.xlu0 %v1396, 121
      %v1512 = vpop.permute.xlu0 %1511
      %1513 = vrot.lane.b32.xlu0 %v1398, 121
      %v1514 = vpop.permute.xlu0 %1513
      %1515 = vrot.lane.b32.xlu0 %v1400, 121
      %v1516 = vpop.permute.xlu0 %1515
      %1517 = vrot.lane.b32.xlu0 %v1402, 121
      %v1518 = vpop.permute.xlu0 %1517
      %1519 = vrot.lane.b32.xlu0 %v1408, 121
      %v1520 = vpop.permute.xlu0 %1519
      %1521 = vrot.lane.b32.xlu0 %v1410, 121
      %v1522 = vpop.permute.xlu0 %1521
      %1523 = vrot.lane.b32.xlu0 %v1412, 121
      %v1524 = vpop.permute.xlu0 %1523
      %1525 = vrot.lane.b32.xlu0 %v1414, 121
      %v1526 = vpop.permute.xlu0 %1525
      %v1564 = vsel %vm894, %v1417, 0
      %v1567 = vsel %vm894, %v1420, 0
      %v1570 = vsel %vm894, %v1423, 0
      %v1573 = vsel %vm894, %v1426, 0
      %1575 = vmatprep.subr.mxu0 0.0
      %1576 = vmatpush1.msra.mxu0 %v1486
      %1577 = vmatprep.subr.mxu0 0.0
      %1578 = vmatpush1.msra.mxu0 %v1484
      %1579 = vmatprep.subr.mxu0 0.0
      %1580 = vmatpush1.msra.mxu0 %v1482
      %1581 = vmatprep.subr.mxu0 0.0
      %1582 = vmatpush1.msra.mxu0 %v1480
      %1583 = vmatprep.subr.mxu0 0.0
      %1584 = vmatpush1.msra.mxu0 %v1478
      %1585 = vmatprep.subr.mxu0 0.0
      %1586 = vmatpush1.msra.mxu0 %v1476
      %1587 = vmatprep.subr.mxu0 0.0
      %1588 = vmatpush1.msra.mxu0 %v1474
      %1589 = vmatprep.subr.mxu0 0.0
      %1590 = vmatpush1.msra.mxu0 %v1472
      %1591 = vmatprep.subr.mxu0 0.0
      %1592 = vmatpush1.msra.mxu0 %v1470
      %1593 = vmatprep.subr.mxu0 0.0
      %1594 = vmatpush1.msra.mxu0 %v1468
      %1595 = vmatprep.subr.mxu0 0.0
      %1596 = vmatpush1.msra.mxu0 %v1466
      %1597 = vmatprep.subr.mxu0 0.0
      %1598 = vmatpush1.msra.mxu0 %v1464
      %1599 = vmatprep.subr.mxu0 0.0
      %1600 = vmatpush1.msra.mxu0 %v1462
      %1601 = vmatprep.subr.mxu0 0.0
      %1602 = vmatpush1.msra.mxu0 %v1460
      %1603 = vmatprep.subr.mxu0 0.0
      %1604 = vmatpush1.msra.mxu0 %v1458
      %1605 = vmatprep.subr.mxu0 0.0
      %1606 = vmatpush1.msra.mxu0 %v1456
      %1607 = vmatprep.subr.mxu0 0.0
      %1608 = vmatpush2.msra.mxu0 %v1518
      %1609 = vmatprep.subr.mxu0 0.0
      %1610 = vmatpush2.msra.mxu0 %v1516
      %1611 = vmatprep.subr.mxu0 0.0
      %1612 = vmatpush2.msra.mxu0 %v1514
      %1613 = vmatprep.subr.mxu0 0.0
      %1614 = vmatpush2.msra.mxu0 %v1512
      %1615 = vmatprep.subr.mxu0 0.0
      %1616 = vmatpush2.msra.mxu0 %v1510
      %1617 = vmatprep.subr.mxu0 0.0
      %1618 = vmatpush2.msra.mxu0 %v1508
      %1619 = vmatprep.subr.mxu0 0.0
      %1620 = vmatpush2.msra.mxu0 %v1506
      %1621 = vmatprep.subr.mxu0 0.0
      %1622 = vmatpush2.msra.mxu0 %v1504
      %1623 = vmatprep.subr.mxu0 0.0
      %1624 = vmatpush2.msra.mxu0 %v1502
      %1625 = vmatprep.subr.mxu0 0.0
      %1626 = vmatpush2.msra.mxu0 %v1500
      %1627 = vmatprep.subr.mxu0 0.0
      %1628 = vmatpush2.msra.mxu0 %v1498
      %1629 = vmatprep.subr.mxu0 0.0
      %1630 = vmatpush2.msra.mxu0 %v1496
      %1631 = vmatprep.subr.mxu0 0.0
      %1632 = vmatpush2.msra.mxu0 %v1494
      %1633 = vmatprep.subr.mxu0 0.0
      %1634 = vmatpush2.msra.mxu0 %v1492
      %1635 = vmatprep.subr.mxu0 0.0
      %1636 = vmatpush2.msra.mxu0 %v1490
      %1637 = vmatprep.subr.mxu0 0.0
      %1638 = vmatpush2.msra.mxu0 %v1488
      %1639 = vmatprep.mubr.f32.mxu0 %v1416
      %1640 = vmatmul.mubr.f32.gmra.mxu0 %v1415
      %v1641 = vpop.f32.mrf.mxu0
      %v1642 = vadd.f32 %v1434, %v1641
      %v1643 = vpop.f32.mrf.mxu0
      %1644 = vmatprep.mubr.f32.mxu0 %v1419
      %1645 = vmatmul.mubr.f32.gmra.mxu0 %v1418
      %v1646 = vpop.f32.mrf.mxu0
      %v1647 = vadd.f32 %v1439, %v1646
      %v1648 = vpop.f32.mrf.mxu0
      %1649 = vmatprep.mubr.f32.mxu0 %v1422
      %1650 = vmatmul.mubr.f32.gmra.mxu0 %v1421
      %v1651 = vpop.f32.mrf.mxu0
      %v1652 = vadd.f32 %v1444, %v1651
      %v1653 = vpop.f32.mrf.mxu0
      %1654 = vmatprep.mubr.f32.mxu0 %v1425
      %1655 = vmatmul.mubr.f32.gmra.mxu0 %v1424
      %v1656 = vpop.f32.mrf.mxu0
      %v1657 = vadd.f32 %v1449, %v1656
      %v1658 = vpop.f32.mrf.mxu0
      %1659 = vdwg.mxu0
      %1660 = vmatprep.subr.mxu0 0.0
      %1661 = vmatpush1.msra.mxu0 0.0
      %1662 = vmatprep.subr.mxu0 0.0
      %1663 = vmatpush1.msra.mxu0 0.0
      %1664 = vmatprep.subr.mxu0 0.0
      %1665 = vmatpush1.msra.mxu0 0.0
      %1666 = vmatprep.subr.mxu0 0.0
      %1667 = vmatpush1.msra.mxu0 0.0
      %1668 = vmatprep.subr.mxu0 0.0
      %1669 = vmatpush1.msra.mxu0 0.0
      %1670 = vmatprep.subr.mxu0 0.0
      %1671 = vmatpush1.msra.mxu0 0.0
      %1672 = vmatprep.subr.mxu0 0.0
      %1673 = vmatpush1.msra.mxu0 0.0
      %1674 = vmatprep.subr.mxu0 0.0
      %1675 = vmatpush1.msra.mxu0 0.0
      %1676 = vmatprep.subr.mxu0 0.0
      %1677 = vmatpush1.msra.mxu0 0.0
      %1678 = vmatprep.subr.mxu0 0.0
      %1679 = vmatpush1.msra.mxu0 0.0
      %1680 = vmatprep.subr.mxu0 0.0
      %1681 = vmatpush1.msra.mxu0 0.0
      %1682 = vmatprep.subr.mxu0 0.0
      %1683 = vmatpush1.msra.mxu0 0.0
      %1684 = vmatprep.subr.mxu0 0.0
      %1685 = vmatpush1.msra.mxu0 %v1526
      %1686 = vmatprep.subr.mxu0 0.0
      %1687 = vmatpush1.msra.mxu0 %v1524
      %1688 = vmatprep.subr.mxu0 0.0
      %1689 = vmatpush1.msra.mxu0 %v1522
      %1690 = vmatprep.subr.mxu0 0.0
      %1691 = vmatpush1.msra.mxu0 %v1520
      %1692 = vmatprep.subr.mxu0 0.0
      %1693 = vmatpush2.msra.mxu0 0.0
      %1694 = vmatprep.subr.mxu0 0.0
      %1695 = vmatpush2.msra.mxu0 0.0
      %1696 = vmatprep.subr.mxu0 0.0
      %1697 = vmatpush2.msra.mxu0 0.0
      %1698 = vmatprep.subr.mxu0 0.0
      %1699 = vmatpush2.msra.mxu0 0.0
      %1700 = vmatprep.subr.mxu0 0.0
      %1701 = vmatpush2.msra.mxu0 0.0
      %1702 = vmatprep.subr.mxu0 0.0
      %1703 = vmatpush2.msra.mxu0 0.0
      %1704 = vmatprep.subr.mxu0 0.0
      %1705 = vmatpush2.msra.mxu0 0.0
      %1706 = vmatprep.subr.mxu0 0.0
      %1707 = vmatpush2.msra.mxu0 0.0
      %1708 = vmatprep.subr.mxu0 0.0
      %1709 = vmatpush2.msra.mxu0 0.0
      %1710 = vmatprep.subr.mxu0 0.0
      %1711 = vmatpush2.msra.mxu0 0.0
      %1712 = vmatprep.subr.mxu0 0.0
      %1713 = vmatpush2.msra.mxu0 0.0
      %1714 = vmatprep.subr.mxu0 0.0
      %1715 = vmatpush2.msra.mxu0 0.0
      %1716 = vmatprep.subr.mxu0 0.0
      %1717 = vmatpush2.msra.mxu0 0.0
      %1718 = vmatprep.subr.mxu0 0.0
      %1719 = vmatpush2.msra.mxu0 0.0
      %1720 = vmatprep.subr.mxu0 0.0
      %1721 = vmatpush2.msra.mxu0 0.0
      %1722 = vmatprep.subr.mxu0 0.0
      %1723 = vmatpush2.msra.mxu0 0.0
      %1724 = vmatprep.mubr.f32.mxu0 0.0
      %1725 = vmatmul.mubr.f32.gmra.mxu0 %v1564
      %v1726 = vpop.f32.mrf.mxu0
      %v1727 = vadd.f32 %v1642, %v1726
      %v1728 = vpop.f32.mrf.mxu0
      %1729 = vmatprep.mubr.f32.mxu0 0.0
      %1730 = vmatmul.mubr.f32.gmra.mxu0 %v1567
      %v1731 = vpop.f32.mrf.mxu0
      %v1732 = vadd.f32 %v1647, %v1731
      %v1733 = vpop.f32.mrf.mxu0
      %1734 = vmatprep.mubr.f32.mxu0 0.0
      %1735 = vmatmul.mubr.f32.gmra.mxu0 %v1570
      %v1736 = vpop.f32.mrf.mxu0
      %v1737 = vadd.f32 %v1652, %v1736
      %v1738 = vpop.f32.mrf.mxu0
      %1739 = vmatprep.mubr.f32.mxu0 0.0
      %1740 = vmatmul.mubr.f32.gmra.mxu0 %v1573
      %v1741 = vpop.f32.mrf.mxu0
      %v1742 = vadd.f32 %v1657, %v1741
      %v1743 = vpop.f32.mrf.mxu0
      %1744 = vdwg.mxu0
      %v1745 = vadd.f32 %v1727, %v428
      %v1746 = vadd.f32 %v1732, %v429
      %v1747 = vadd.f32 %v1737, %v430
      %v1748 = vadd.f32 %v1742, %v431
      %1749 = vst.msk [vmem:[%s427] sm:$0xff] %vm451, %v1745
      %1750 = vst.msk [vmem:[%s427 + $0x8] sm:$0xff] %vm451, %v1746
      %1751 = vst.msk [vmem:[%s427 + $0x10] sm:$0xff] %vm451, %v1747
      %1752 = vst.msk [vmem:[%s427 + $0x18] sm:$0xff] %vm451, %v1748
      %p1753 = scmp.lt.s32.totalorder %s23, 1
      %s1754 = scalar_select %p1753, %s23, 1
      %s1755 = smul.addr %s1754, 4
      %s1756 = smul.addr %s1755, 8
      %s1757 = scalar_lea.vmem %s12, %s1756
      // Predicated region
      $region69: #{_resblock_forward_impl.1} parent=67 // pred_check
        %p1758 = pneg %p303
      $region70: #{_resblock_forward_impl.1} parent=67 // pred_check_branch
        %1760 = sbr.rel (%p1758) target = $region72
      $region71: #{_resblock_forward_impl.1} parent=67 // pred_region
        _
      $region72: #{_resblock_forward_impl.1} parent=67 // pred_fallthru
        _
    $region68: #{_resblock_forward_impl.1} parent=5 // pred_fallthru
      _
    %p1761 = scmp.le.s32.totalorder 2, %s18
    // Predicated region
    $region73: #{_resblock_forward_impl.1} parent=5 // pred_check
      %p1762 = pneg %p1761
    $region74: #{_resblock_forward_impl.1} parent=5 // pred_check_branch
      %1764 = sbr.rel (%p1762) target = $region76
    $region75: #{_resblock_forward_impl.1} parent=5 // pred_region
      %s1765 = ssub.s32 %s18, 2
      // Predicated region
      $region77: #{_resblock_forward_impl.1} parent=75 // pred_check
        %p1766 = pneg %p309
      $region78: #{_resblock_forward_impl.1} parent=75 // pred_check_branch
        %1768 = sbr.rel (%p1766) target = $region80
      $region79: #{_resblock_forward_impl.1} parent=75 // pred_region
        %p1769 = scmp.lt.s32.totalorder %s24, 1
        %s1770 = scalar_select %p1769, %s24, 1
        %s1771 = smul.addr %s1770, 4
        %s1772 = smul.addr %s1771, 8
        %s1773 = scalar_lea.vmem %s12, %s1772
      $region80: #{_resblock_forward_impl.1} parent=75 // pred_fallthru
        _
    $region76: #{_resblock_forward_impl.1} parent=5 // pred_fallthru
      _
  $region6: #{_resblock_forward_impl.1} parent=0 // loop_footer
    %s22 = sadd.s32 1, %s18
  $region7: #{_resblock_forward_impl.1} parent=0 // loop_footer_branch
    %17 = sbr.rel target = $region3
  $region8: #{_resblock_forward_impl.1} parent=0 // loop_exit
    _

</llo_original>
